<compile_context>
chip_gen: v6e
topology: v6e:2x2x1
jax: 0.10.0
libtpu: 0.0.40
codegen_flags: <defaults>
</compile_context>

<pallas_src>
import functools

import jax
import jax.numpy as jnp
from jax.experimental import pallas as pl
from jax.experimental.pallas import tpu as pltpu


def _lstm_kernel(x_ref, wih_ref, whh_ref, b_ref, out_ref, hn_ref, cn_ref,
                 gx_ref):
    """Whole LSTM forward in one kernel invocation.

    x_ref:   (B*S, F)   batch-major rows (row b*S + t = batch b, step t)
    wih_ref: (F, 4H)    W_ih^T, gate columns reordered to (i, f, o, g)
    whh_ref: (H, 4H)    W_hh^T, same column order
    b_ref:   (1, 4H)    b_ih + b_hh, same column order
    out_ref: (B, S*H)   lane-dense batch_first output slab
    hn_ref:  (B, H)     final hidden state
    cn_ref:  (B, H)     final cell state
    gx_ref:  (B, S, 4H) VMEM scratch holding the hoisted input projection
    """
    B, S, G = gx_ref.shape
    H = hn_ref.shape[1]

    whh = whh_ref[...]                                          # (H, 4H)

    # --- Hoisted input projection: one MXU matmul covers every (b, t) row,
    #     entirely off the serial h -> gates dependency chain. -------------
    gx = (jnp.dot(x_ref[...], wih_ref[...],
                  preferred_element_type=jnp.float32)
          + b_ref[...])                                         # (B*S, 4H)
    for b in range(B):                     # static; dense per-batch tile store
        gx_ref[b] = gx[b * S:(b + 1) * S, :]

    h = jnp.zeros((B, H), jnp.float32)
    c = jnp.zeros((B, H), jnp.float32)

    # --- Fully unrolled serial recurrence (S is small & static). ----------
    for t in range(S):
        gates = gx_ref[:, t, :] + jnp.dot(
            h, whh, preferred_element_type=jnp.float32)         # (B, 4H)

        # Columns pre-reordered to (i, f, o, g): one contiguous sigmoid pass
        # over 3H lanes + one tanh pass over H lanes per step.
        sig = jax.nn.sigmoid(gates[:, :3 * H])
        g_g = jnp.tanh(gates[:, 3 * H:])
        i_g = sig[:, 0:H]
        f_g = sig[:, H:2 * H]
        o_g = sig[:, 2 * H:3 * H]

        c = f_g * c + i_g * g_g
        h = o_g * jnp.tanh(c)

        # Lane-dense batch_first store: step t occupies lanes [t*H, (t+1)*H).
        out_ref[:, t * H:(t + 1) * H] = h.astype(out_ref.dtype)

    hn_ref[...] = h.astype(hn_ref.dtype)                        # written once
    cn_ref[...] = c.astype(cn_ref.dtype)


def prepare_lstm_params(w_ih, w_hh, b_ih, b_hh):
    """One-time (per model, outside the per-call jit path) parameter prep.

    Transposes weights, folds the two biases, casts to f32, and reorders the
    4H gate columns from PyTorch's (i, f, g, o) to (i, f, o, g) so the kernel
    can fuse the three sigmoid gates into one contiguous EUP pass.
    """
    H4 = w_ih.shape[0]
    H = H4 // 4

    def reorder(m):  # m: (..., 4H) in (i, f, g, o) order -> (i, f, o, g)
        return jnp.concatenate(
            [m[..., :2 * H], m[..., 3 * H:4 * H], m[..., 2 * H:3 * H]],
            axis=-1)

    wih_t = reorder(jnp.transpose(w_ih).astype(jnp.float32))        # (F, 4H)
    whh_t = reorder(jnp.transpose(w_hh).astype(jnp.float32))        # (H, 4H)
    bias = reorder((b_ih + b_hh).astype(jnp.float32).reshape(1, H4))  # (1,4H)
    return wih_t, whh_t, bias


@functools.partial(jax.jit, static_argnames=("hidden_size",))
def rnn_encoder_forward(x, wih_t, whh_t, bias, *, hidden_size):
    """Mirrors RNNEncoder.forward: returns (output, (h_n, c_n)).

    x:      (batch, seq_len, n_features)  -- batch_first, like the nn.LSTM
    wih_t:  (n_features, 4H), whh_t: (H, 4H), bias: (1, 4H)  -- from
            prepare_lstm_params (called once at model setup).
    """
    B, S, F = x.shape
    H = hidden_size

    # Free row-major collapse (no data movement): rows ordered b*S + t.
    x2d = x.reshape(B * S, F).astype(jnp.float32)

    vmem = pl.BlockSpec(memory_space=pltpu.MemorySpace.VMEM)

    out_flat, h_n, c_n = pl.pallas_call(
        _lstm_kernel,
        out_shape=(
            jax.ShapeDtypeStruct((B, S * H), jnp.float32),  # lane-dense slab
            jax.ShapeDtypeStruct((B, H), jnp.float32),      # h_n
            jax.ShapeDtypeStruct((B, H), jnp.float32),      # c_n
        ),
        in_specs=[vmem, vmem, vmem, vmem],
        out_specs=(vmem, vmem, vmem),
        scratch_shapes=[pltpu.VMEM((B, S, 4 * H), jnp.float32)],
    )(x2d, wih_t, whh_t, bias)

    output = out_flat.reshape(B, S, H)        # free reshape, already batch_first
    hidden = (h_n[None], c_n[None])           # (1, B, H) each, like nn.LSTM
    return output, hidden


def _reference_lstm(x, w_ih, w_hh, b_ih, b_hh, H):
    """Pure-JAX reference of torch.nn.LSTM forward (zero initial state),
    using the ORIGINAL (i, f, g, o) gate order / raw weights."""
    wih_t = w_ih.T
    whh_t = w_hh.T
    bias = b_ih + b_hh

    def step(carry, x_t):
        h, c = carry
        gates = x_t @ wih_t + h @ whh_t + bias
        i = jax.nn.sigmoid(gates[:, 0:H])
        f = jax.nn.sigmoid(gates[:, H:2 * H])
        g = jnp.tanh(gates[:, 2 * H:3 * H])
        o = jax.nn.sigmoid(gates[:, 3 * H:4 * H])
        c = f * c + i * g
        h = o * jnp.tanh(c)
        return (h, c), h

    B = x.shape[0]
    h0 = jnp.zeros((B, H), jnp.float32)
    c0 = jnp.zeros((B, H), jnp.float32)
    (hn, cn), outs = jax.lax.scan(step, (h0, c0), jnp.transpose(x, (1, 0, 2)))
    return jnp.transpose(outs, (1, 0, 2)), (hn[None], cn[None])


if __name__ == "__main__":
    # Small shapes implied by the module: batch=2, seq=8, n_features=4,
    # lstm1_dim (hidden_size_1) = 32.
    B, S, F, H = 2, 8, 4, 32

    key = jax.random.PRNGKey(0)
    kx, k1, k2, k3, k4 = jax.random.split(key, 5)

    # Deterministic parameters, PyTorch-style uniform(-1/sqrt(H), 1/sqrt(H)).
    bound = 1.0 / jnp.sqrt(jnp.float32(H))
    x = jax.random.normal(kx, (B, S, F), dtype=jnp.float32)
    w_ih = jax.random.uniform(k1, (4 * H, F), jnp.float32, -bound, bound)
    w_hh = jax.random.uniform(k2, (4 * H, H), jnp.float32, -bound, bound)
    b_ih = jax.random.uniform(k3, (4 * H,), jnp.float32, -bound, bound)
    b_hh = jax.random.uniform(k4, (4 * H,), jnp.float32, -bound, bound)

    # One-time parameter prep (hoisted out of the per-forward-call path).
    wih_t, whh_t, bias = prepare_lstm_params(w_ih, w_hh, b_ih, b_hh)
    jax.block_until_ready((wih_t, whh_t, bias))

    output, (h_n, c_n) = rnn_encoder_forward(x, wih_t, whh_t, bias,
                                             hidden_size=H)
    jax.block_until_ready((output, h_n, c_n))

    # Correctness check against a pure-JAX scan reference using the raw
    # (unreordered) weights -- this also validates the gate-column reorder.
    ref_out, (ref_hn, ref_cn) = _reference_lstm(x, w_ih, w_hh, b_ih, b_hh, H)
    assert output.shape == (B, S, H)
    assert h_n.shape == (1, B, H) and c_n.shape == (1, B, H)
    assert jnp.allclose(output, ref_out, atol=1e-5, rtol=1e-5)
    assert jnp.allclose(h_n, ref_hn, atol=1e-5, rtol=1e-5)
    assert jnp.allclose(c_n, ref_cn, atol=1e-5, rtol=1e-5)

    print("KERNEL_OK")
</pallas_src>

<mosaic_0001>
module attributes {stable_mosaic.version = 11 : i64} {
  func.func @_lstm_kernel(%arg0: memref<16x4xf32, #tpu.memory_space<vmem>>, %arg1: memref<4x128xf32, #tpu.memory_space<vmem>>, %arg2: memref<32x128xf32, #tpu.memory_space<vmem>>, %arg3: memref<1x128xf32, #tpu.memory_space<vmem>>, %arg4: memref<2x256xf32, #tpu.memory_space<vmem>>, %arg5: memref<2x32xf32, #tpu.memory_space<vmem>>, %arg6: memref<2x32xf32, #tpu.memory_space<vmem>>, %arg7: memref<2x8x128xf32, #tpu.memory_space<vmem>>) attributes {dimension_semantics = [], scalar_prefetch = 0 : i64, scratch_operands = 1 : i64, tpu.core_type = #tpu.core_type<tc>} {
    %c0 = arith.constant 0 : index
    %c0_0 = arith.constant 0 : index
    %0 = vector.load %arg2[%c0, %c0_0] : memref<32x128xf32, #tpu.memory_space<vmem>>, vector<32x128xf32>
    %c0_1 = arith.constant 0 : index
    %c0_2 = arith.constant 0 : index
    %1 = vector.load %arg0[%c0_1, %c0_2] : memref<16x4xf32, #tpu.memory_space<vmem>>, vector<16x4xf32>
    %c0_3 = arith.constant 0 : index
    %c0_4 = arith.constant 0 : index
    %2 = vector.load %arg1[%c0_3, %c0_4] : memref<4x128xf32, #tpu.memory_space<vmem>>, vector<4x128xf32>
    %cst = arith.constant dense<0.000000e+00> : vector<16x128xf32>
    %3 = tpu.matmul %1, %2, %cst {dimension_numbers = #tpu.dot_dimension_numbers<[1], [0], [0], [1], [0, 0, 1, 1], [], []>} : vector<16x4xf32>, vector<4x128xf32>, vector<16x128xf32> -> vector<16x128xf32>
    %c0_5 = arith.constant 0 : index
    %c0_6 = arith.constant 0 : index
    %4 = vector.load %arg3[%c0_5, %c0_6] : memref<1x128xf32, #tpu.memory_space<vmem>>, vector<1x128xf32>
    %5 = vector.broadcast %4 : vector<1x128xf32> to vector<16x128xf32>
    %6 = arith.addf %3, %5 : vector<16x128xf32>
    %7 = vector.extract_strided_slice %6 {offsets = [0, 0], sizes = [8, 128], strides = [1, 1]} : vector<16x128xf32> to vector<8x128xf32>
    %c0_7 = arith.constant 0 : index
    %c0_8 = arith.constant 0 : index
    %c0_9 = arith.constant 0 : index
    %8 = vector.load %arg7[%c0_7, %c0_8, %c0_9] : memref<2x8x128xf32, #tpu.memory_space<vmem>>, vector<1x8x128xf32>
    %9 = vector.shape_cast %8 : vector<1x8x128xf32> to vector<8x128xf32>
    %10 = vector.shape_cast %7 : vector<8x128xf32> to vector<1x8x128xf32>
    tpu.vector_store %arg7[%c0_7, %c0_8, %c0_9], %10 {strides = array<i32>} : memref<2x8x128xf32, #tpu.memory_space<vmem>>, vector<1x8x128xf32>,
    %11 = vector.extract_strided_slice %6 {offsets = [8, 0], sizes = [8, 128], strides = [1, 1]} : vector<16x128xf32> to vector<8x128xf32>
    %c1 = arith.constant 1 : index
    %c0_10 = arith.constant 0 : index
    %c0_11 = arith.constant 0 : index
    %12 = vector.load %arg7[%c1, %c0_10, %c0_11] : memref<2x8x128xf32, #tpu.memory_space<vmem>>, vector<1x8x128xf32>
    %13 = vector.shape_cast %12 : vector<1x8x128xf32> to vector<8x128xf32>
    %14 = vector.shape_cast %11 : vector<8x128xf32> to vector<1x8x128xf32>
    tpu.vector_store %arg7[%c1, %c0_10, %c0_11], %14 {strides = array<i32>} : memref<2x8x128xf32, #tpu.memory_space<vmem>>, vector<1x8x128xf32>,
    %cst_12 = arith.constant 0.000000e+00 : f32
    %15 = vector.broadcast %cst_12 : f32 to vector<2x32xf32>
    %cst_13 = arith.constant 0.000000e+00 : f32
    %16 = vector.broadcast %cst_13 : f32 to vector<2x32xf32>
    %c0_14 = arith.constant 0 : index
    %c0_15 = arith.constant 0 : index
    %c0_16 = arith.constant 0 : index
    %17 = vector.load %arg7[%c0_14, %c0_15, %c0_16] : memref<2x8x128xf32, #tpu.memory_space<vmem>>, vector<2x1x128xf32>
    %18 = vector.shape_cast %17 : vector<2x1x128xf32> to vector<2x128xf32>
    %cst_17 = arith.constant dense<0.000000e+00> : vector<2x128xf32>
    %19 = tpu.matmul %15, %0, %cst_17 {dimension_numbers = #tpu.dot_dimension_numbers<[1], [0], [0], [1], [0, 0, 1, 1], [], []>} : vector<2x32xf32>, vector<32x128xf32>, vector<2x128xf32> -> vector<2x128xf32>
    %20 = arith.addf %18, %19 : vector<2x128xf32>
    %21 = vector.extract_strided_slice %20 {offsets = [0, 0], sizes = [2, 96], strides = [1, 1]} : vector<2x128xf32> to vector<2x96xf32>
    %22 = arith.negf %21 : vector<2x96xf32>
    %23 = math.exp %22 : vector<2x96xf32>
    %cst_18 = arith.constant 1.000000e+00 : f32
    %24 = vector.broadcast %cst_18 : f32 to vector<2x96xf32>
    %25 = arith.addf %24, %23 : vector<2x96xf32>
    %26 = arith.divf %24, %25 : vector<2x96xf32>
    %27 = vector.extract_strided_slice %20 {offsets = [0, 96], sizes = [2, 32], strides = [1, 1]} : vector<2x128xf32> to vector<2x32xf32>
    %28 = math.tanh %27 : vector<2x32xf32>
    %29 = vector.extract_strided_slice %26 {offsets = [0, 0], sizes = [2, 32], strides = [1, 1]} : vector<2x96xf32> to vector<2x32xf32>
    %30 = vector.extract_strided_slice %26 {offsets = [0, 32], sizes = [2, 32], strides = [1, 1]} : vector<2x96xf32> to vector<2x32xf32>
    %31 = vector.extract_strided_slice %26 {offsets = [0, 64], sizes = [2, 32], strides = [1, 1]} : vector<2x96xf32> to vector<2x32xf32>
    %32 = arith.mulf %30, %16 : vector<2x32xf32>
    %33 = arith.mulf %29, %28 : vector<2x32xf32>
    %34 = arith.addf %32, %33 : vector<2x32xf32>
    %35 = math.tanh %34 : vector<2x32xf32>
    %36 = arith.mulf %31, %35 : vector<2x32xf32>
    %c0_19 = arith.constant 0 : index
    %c0_20 = arith.constant 0 : index
    %37 = vector.load %arg4[%c0_19, %c0_20] : memref<2x256xf32, #tpu.memory_space<vmem>>, vector<2x32xf32>
    tpu.vector_store %arg4[%c0_19, %c0_20], %36 {strides = array<i32>} : memref<2x256xf32, #tpu.memory_space<vmem>>, vector<2x32xf32>,
    %c0_21 = arith.constant 0 : index
    %c1_22 = arith.constant 1 : index
    %c0_23 = arith.constant 0 : index
    %38 = vector.load %arg7[%c0_21, %c1_22, %c0_23] : memref<2x8x128xf32, #tpu.memory_space<vmem>>, vector<2x1x128xf32>
    %39 = vector.shape_cast %38 : vector<2x1x128xf32> to vector<2x128xf32>
    %cst_24 = arith.constant dense<0.000000e+00> : vector<2x128xf32>
    %40 = tpu.matmul %36, %0, %cst_24 {dimension_numbers = #tpu.dot_dimension_numbers<[1], [0], [0], [1], [0, 0, 1, 1], [], []>} : vector<2x32xf32>, vector<32x128xf32>, vector<2x128xf32> -> vector<2x128xf32>
    %41 = arith.addf %39, %40 : vector<2x128xf32>
    %42 = vector.extract_strided_slice %41 {offsets = [0, 0], sizes = [2, 96], strides = [1, 1]} : vector<2x128xf32> to vector<2x96xf32>
    %43 = arith.negf %42 : vector<2x96xf32>
    %44 = math.exp %43 : vector<2x96xf32>
    %cst_25 = arith.constant 1.000000e+00 : f32
    %45 = vector.broadcast %cst_25 : f32 to vector<2x96xf32>
    %46 = arith.addf %45, %44 : vector<2x96xf32>
    %47 = arith.divf %45, %46 : vector<2x96xf32>
    %48 = vector.extract_strided_slice %41 {offsets = [0, 96], sizes = [2, 32], strides = [1, 1]} : vector<2x128xf32> to vector<2x32xf32>
    %49 = math.tanh %48 : vector<2x32xf32>
    %50 = vector.extract_strided_slice %47 {offsets = [0, 0], sizes = [2, 32], strides = [1, 1]} : vector<2x96xf32> to vector<2x32xf32>
    %51 = vector.extract_strided_slice %47 {offsets = [0, 32], sizes = [2, 32], strides = [1, 1]} : vector<2x96xf32> to vector<2x32xf32>
    %52 = vector.extract_strided_slice %47 {offsets = [0, 64], sizes = [2, 32], strides = [1, 1]} : vector<2x96xf32> to vector<2x32xf32>
    %53 = arith.mulf %51, %34 : vector<2x32xf32>
    %54 = arith.mulf %50, %49 : vector<2x32xf32>
    %55 = arith.addf %53, %54 : vector<2x32xf32>
    %56 = math.tanh %55 : vector<2x32xf32>
    %57 = arith.mulf %52, %56 : vector<2x32xf32>
    %c0_26 = arith.constant 0 : index
    %c32 = arith.constant 32 : index
    %58 = vector.load %arg4[%c0_26, %c32] : memref<2x256xf32, #tpu.memory_space<vmem>>, vector<2x32xf32>
    tpu.vector_store %arg4[%c0_26, %c32], %57 {strides = array<i32>} : memref<2x256xf32, #tpu.memory_space<vmem>>, vector<2x32xf32>,
    %c0_27 = arith.constant 0 : index
    %c2 = arith.constant 2 : index
    %c0_28 = arith.constant 0 : index
    %59 = vector.load %arg7[%c0_27, %c2, %c0_28] : memref<2x8x128xf32, #tpu.memory_space<vmem>>, vector<2x1x128xf32>
    %60 = vector.shape_cast %59 : vector<2x1x128xf32> to vector<2x128xf32>
    %cst_29 = arith.constant dense<0.000000e+00> : vector<2x128xf32>
    %61 = tpu.matmul %57, %0, %cst_29 {dimension_numbers = #tpu.dot_dimension_numbers<[1], [0], [0], [1], [0, 0, 1, 1], [], []>} : vector<2x32xf32>, vector<32x128xf32>, vector<2x128xf32> -> vector<2x128xf32>
    %62 = arith.addf %60, %61 : vector<2x128xf32>
    %63 = vector.extract_strided_slice %62 {offsets = [0, 0], sizes = [2, 96], strides = [1, 1]} : vector<2x128xf32> to vector<2x96xf32>
    %64 = arith.negf %63 : vector<2x96xf32>
    %65 = math.exp %64 : vector<2x96xf32>
    %cst_30 = arith.constant 1.000000e+00 : f32
    %66 = vector.broadcast %cst_30 : f32 to vector<2x96xf32>
    %67 = arith.addf %66, %65 : vector<2x96xf32>
    %68 = arith.divf %66, %67 : vector<2x96xf32>
    %69 = vector.extract_strided_slice %62 {offsets = [0, 96], sizes = [2, 32], strides = [1, 1]} : vector<2x128xf32> to vector<2x32xf32>
    %70 = math.tanh %69 : vector<2x32xf32>
    %71 = vector.extract_strided_slice %68 {offsets = [0, 0], sizes = [2, 32], strides = [1, 1]} : vector<2x96xf32> to vector<2x32xf32>
    %72 = vector.extract_strided_slice %68 {offsets = [0, 32], sizes = [2, 32], strides = [1, 1]} : vector<2x96xf32> to vector<2x32xf32>
    %73 = vector.extract_strided_slice %68 {offsets = [0, 64], sizes = [2, 32], strides = [1, 1]} : vector<2x96xf32> to vector<2x32xf32>
    %74 = arith.mulf %72, %55 : vector<2x32xf32>
    %75 = arith.mulf %71, %70 : vector<2x32xf32>
    %76 = arith.addf %74, %75 : vector<2x32xf32>
    %77 = math.tanh %76 : vector<2x32xf32>
    %78 = arith.mulf %73, %77 : vector<2x32xf32>
    %c0_31 = arith.constant 0 : index
    %c64 = arith.constant 64 : index
    %79 = vector.load %arg4[%c0_31, %c64] : memref<2x256xf32, #tpu.memory_space<vmem>>, vector<2x32xf32>
    tpu.vector_store %arg4[%c0_31, %c64], %78 {strides = array<i32>} : memref<2x256xf32, #tpu.memory_space<vmem>>, vector<2x32xf32>,
    %c0_32 = arith.constant 0 : index
    %c3 = arith.constant 3 : index
    %c0_33 = arith.constant 0 : index
    %80 = vector.load %arg7[%c0_32, %c3, %c0_33] : memref<2x8x128xf32, #tpu.memory_space<vmem>>, vector<2x1x128xf32>
    %81 = vector.shape_cast %80 : vector<2x1x128xf32> to vector<2x128xf32>
    %cst_34 = arith.constant dense<0.000000e+00> : vector<2x128xf32>
    %82 = tpu.matmul %78, %0, %cst_34 {dimension_numbers = #tpu.dot_dimension_numbers<[1], [0], [0], [1], [0, 0, 1, 1], [], []>} : vector<2x32xf32>, vector<32x128xf32>, vector<2x128xf32> -> vector<2x128xf32>
    %83 = arith.addf %81, %82 : vector<2x128xf32>
    %84 = vector.extract_strided_slice %83 {offsets = [0, 0], sizes = [2, 96], strides = [1, 1]} : vector<2x128xf32> to vector<2x96xf32>
    %85 = arith.negf %84 : vector<2x96xf32>
    %86 = math.exp %85 : vector<2x96xf32>
    %cst_35 = arith.constant 1.000000e+00 : f32
    %87 = vector.broadcast %cst_35 : f32 to vector<2x96xf32>
    %88 = arith.addf %87, %86 : vector<2x96xf32>
    %89 = arith.divf %87, %88 : vector<2x96xf32>
    %90 = vector.extract_strided_slice %83 {offsets = [0, 96], sizes = [2, 32], strides = [1, 1]} : vector<2x128xf32> to vector<2x32xf32>
    %91 = math.tanh %90 : vector<2x32xf32>
    %92 = vector.extract_strided_slice %89 {offsets = [0, 0], sizes = [2, 32], strides = [1, 1]} : vector<2x96xf32> to vector<2x32xf32>
    %93 = vector.extract_strided_slice %89 {offsets = [0, 32], sizes = [2, 32], strides = [1, 1]} : vector<2x96xf32> to vector<2x32xf32>
    %94 = vector.extract_strided_slice %89 {offsets = [0, 64], sizes = [2, 32], strides = [1, 1]} : vector<2x96xf32> to vector<2x32xf32>
    %95 = arith.mulf %93, %76 : vector<2x32xf32>
    %96 = arith.mulf %92, %91 : vector<2x32xf32>
    %97 = arith.addf %95, %96 : vector<2x32xf32>
    %98 = math.tanh %97 : vector<2x32xf32>
    %99 = arith.mulf %94, %98 : vector<2x32xf32>
    %c0_36 = arith.constant 0 : index
    %c96 = arith.constant 96 : index
    %100 = vector.load %arg4[%c0_36, %c96] : memref<2x256xf32, #tpu.memory_space<vmem>>, vector<2x32xf32>
    tpu.vector_store %arg4[%c0_36, %c96], %99 {strides = array<i32>} : memref<2x256xf32, #tpu.memory_space<vmem>>, vector<2x32xf32>,
    %c0_37 = arith.constant 0 : index
    %c4 = arith.constant 4 : index
    %c0_38 = arith.constant 0 : index
    %101 = vector.load %arg7[%c0_37, %c4, %c0_38] : memref<2x8x128xf32, #tpu.memory_space<vmem>>, vector<2x1x128xf32>
    %102 = vector.shape_cast %101 : vector<2x1x128xf32> to vector<2x128xf32>
    %cst_39 = arith.constant dense<0.000000e+00> : vector<2x128xf32>
    %103 = tpu.matmul %99, %0, %cst_39 {dimension_numbers = #tpu.dot_dimension_numbers<[1], [0], [0], [1], [0, 0, 1, 1], [], []>} : vector<2x32xf32>, vector<32x128xf32>, vector<2x128xf32> -> vector<2x128xf32>
    %104 = arith.addf %102, %103 : vector<2x128xf32>
    %105 = vector.extract_strided_slice %104 {offsets = [0, 0], sizes = [2, 96], strides = [1, 1]} : vector<2x128xf32> to vector<2x96xf32>
    %106 = arith.negf %105 : vector<2x96xf32>
    %107 = math.exp %106 : vector<2x96xf32>
    %cst_40 = arith.constant 1.000000e+00 : f32
    %108 = vector.broadcast %cst_40 : f32 to vector<2x96xf32>
    %109 = arith.addf %108, %107 : vector<2x96xf32>
    %110 = arith.divf %108, %109 : vector<2x96xf32>
    %111 = vector.extract_strided_slice %104 {offsets = [0, 96], sizes = [2, 32], strides = [1, 1]} : vector<2x128xf32> to vector<2x32xf32>
    %112 = math.tanh %111 : vector<2x32xf32>
    %113 = vector.extract_strided_slice %110 {offsets = [0, 0], sizes = [2, 32], strides = [1, 1]} : vector<2x96xf32> to vector<2x32xf32>
    %114 = vector.extract_strided_slice %110 {offsets = [0, 32], sizes = [2, 32], strides = [1, 1]} : vector<2x96xf32> to vector<2x32xf32>
    %115 = vector.extract_strided_slice %110 {offsets = [0, 64], sizes = [2, 32], strides = [1, 1]} : vector<2x96xf32> to vector<2x32xf32>
    %116 = arith.mulf %114, %97 : vector<2x32xf32>
    %117 = arith.mulf %113, %112 : vector<2x32xf32>
    %118 = arith.addf %116, %117 : vector<2x32xf32>
    %119 = math.tanh %118 : vector<2x32xf32>
    %120 = arith.mulf %115, %119 : vector<2x32xf32>
    %c0_41 = arith.constant 0 : index
    %c128 = arith.constant 128 : index
    %121 = vector.load %arg4[%c0_41, %c128] : memref<2x256xf32, #tpu.memory_space<vmem>>, vector<2x32xf32>
    tpu.vector_store %arg4[%c0_41, %c128], %120 {strides = array<i32>} : memref<2x256xf32, #tpu.memory_space<vmem>>, vector<2x32xf32>,
    %c0_42 = arith.constant 0 : index
    %c5 = arith.constant 5 : index
    %c0_43 = arith.constant 0 : index
    %122 = vector.load %arg7[%c0_42, %c5, %c0_43] : memref<2x8x128xf32, #tpu.memory_space<vmem>>, vector<2x1x128xf32>
    %123 = vector.shape_cast %122 : vector<2x1x128xf32> to vector<2x128xf32>
    %cst_44 = arith.constant dense<0.000000e+00> : vector<2x128xf32>
    %124 = tpu.matmul %120, %0, %cst_44 {dimension_numbers = #tpu.dot_dimension_numbers<[1], [0], [0], [1], [0, 0, 1, 1], [], []>} : vector<2x32xf32>, vector<32x128xf32>, vector<2x128xf32> -> vector<2x128xf32>
    %125 = arith.addf %123, %124 : vector<2x128xf32>
    %126 = vector.extract_strided_slice %125 {offsets = [0, 0], sizes = [2, 96], strides = [1, 1]} : vector<2x128xf32> to vector<2x96xf32>
    %127 = arith.negf %126 : vector<2x96xf32>
    %128 = math.exp %127 : vector<2x96xf32>
    %cst_45 = arith.constant 1.000000e+00 : f32
    %129 = vector.broadcast %cst_45 : f32 to vector<2x96xf32>
    %130 = arith.addf %129, %128 : vector<2x96xf32>
    %131 = arith.divf %129, %130 : vector<2x96xf32>
    %132 = vector.extract_strided_slice %125 {offsets = [0, 96], sizes = [2, 32], strides = [1, 1]} : vector<2x128xf32> to vector<2x32xf32>
    %133 = math.tanh %132 : vector<2x32xf32>
    %134 = vector.extract_strided_slice %131 {offsets = [0, 0], sizes = [2, 32], strides = [1, 1]} : vector<2x96xf32> to vector<2x32xf32>
    %135 = vector.extract_strided_slice %131 {offsets = [0, 32], sizes = [2, 32], strides = [1, 1]} : vector<2x96xf32> to vector<2x32xf32>
    %136 = vector.extract_strided_slice %131 {offsets = [0, 64], sizes = [2, 32], strides = [1, 1]} : vector<2x96xf32> to vector<2x32xf32>
    %137 = arith.mulf %135, %118 : vector<2x32xf32>
    %138 = arith.mulf %134, %133 : vector<2x32xf32>
    %139 = arith.addf %137, %138 : vector<2x32xf32>
    %140 = math.tanh %139 : vector<2x32xf32>
    %141 = arith.mulf %136, %140 : vector<2x32xf32>
    %c0_46 = arith.constant 0 : index
    %c160 = arith.constant 160 : index
    %142 = vector.load %arg4[%c0_46, %c160] : memref<2x256xf32, #tpu.memory_space<vmem>>, vector<2x32xf32>
    tpu.vector_store %arg4[%c0_46, %c160], %141 {strides = array<i32>} : memref<2x256xf32, #tpu.memory_space<vmem>>, vector<2x32xf32>,
    %c0_47 = arith.constant 0 : index
    %c6 = arith.constant 6 : index
    %c0_48 = arith.constant 0 : index
    %143 = vector.load %arg7[%c0_47, %c6, %c0_48] : memref<2x8x128xf32, #tpu.memory_space<vmem>>, vector<2x1x128xf32>
    %144 = vector.shape_cast %143 : vector<2x1x128xf32> to vector<2x128xf32>
    %cst_49 = arith.constant dense<0.000000e+00> : vector<2x128xf32>
    %145 = tpu.matmul %141, %0, %cst_49 {dimension_numbers = #tpu.dot_dimension_numbers<[1], [0], [0], [1], [0, 0, 1, 1], [], []>} : vector<2x32xf32>, vector<32x128xf32>, vector<2x128xf32> -> vector<2x128xf32>
    %146 = arith.addf %144, %145 : vector<2x128xf32>
    %147 = vector.extract_strided_slice %146 {offsets = [0, 0], sizes = [2, 96], strides = [1, 1]} : vector<2x128xf32> to vector<2x96xf32>
    %148 = arith.negf %147 : vector<2x96xf32>
    %149 = math.exp %148 : vector<2x96xf32>
    %cst_50 = arith.constant 1.000000e+00 : f32
    %150 = vector.broadcast %cst_50 : f32 to vector<2x96xf32>
    %151 = arith.addf %150, %149 : vector<2x96xf32>
    %152 = arith.divf %150, %151 : vector<2x96xf32>
    %153 = vector.extract_strided_slice %146 {offsets = [0, 96], sizes = [2, 32], strides = [1, 1]} : vector<2x128xf32> to vector<2x32xf32>
    %154 = math.tanh %153 : vector<2x32xf32>
    %155 = vector.extract_strided_slice %152 {offsets = [0, 0], sizes = [2, 32], strides = [1, 1]} : vector<2x96xf32> to vector<2x32xf32>
    %156 = vector.extract_strided_slice %152 {offsets = [0, 32], sizes = [2, 32], strides = [1, 1]} : vector<2x96xf32> to vector<2x32xf32>
    %157 = vector.extract_strided_slice %152 {offsets = [0, 64], sizes = [2, 32], strides = [1, 1]} : vector<2x96xf32> to vector<2x32xf32>
    %158 = arith.mulf %156, %139 : vector<2x32xf32>
    %159 = arith.mulf %155, %154 : vector<2x32xf32>
    %160 = arith.addf %158, %159 : vector<2x32xf32>
    %161 = math.tanh %160 : vector<2x32xf32>
    %162 = arith.mulf %157, %161 : vector<2x32xf32>
    %c0_51 = arith.constant 0 : index
    %c192 = arith.constant 192 : index
    %163 = vector.load %arg4[%c0_51, %c192] : memref<2x256xf32, #tpu.memory_space<vmem>>, vector<2x32xf32>
    tpu.vector_store %arg4[%c0_51, %c192], %162 {strides = array<i32>} : memref<2x256xf32, #tpu.memory_space<vmem>>, vector<2x32xf32>,
    %c0_52 = arith.constant 0 : index
    %c7 = arith.constant 7 : index
    %c0_53 = arith.constant 0 : index
    %164 = vector.load %arg7[%c0_52, %c7, %c0_53] : memref<2x8x128xf32, #tpu.memory_space<vmem>>, vector<2x1x128xf32>
    %165 = vector.shape_cast %164 : vector<2x1x128xf32> to vector<2x128xf32>
    %cst_54 = arith.constant dense<0.000000e+00> : vector<2x128xf32>
    %166 = tpu.matmul %162, %0, %cst_54 {dimension_numbers = #tpu.dot_dimension_numbers<[1], [0], [0], [1], [0, 0, 1, 1], [], []>} : vector<2x32xf32>, vector<32x128xf32>, vector<2x128xf32> -> vector<2x128xf32>
    %167 = arith.addf %165, %166 : vector<2x128xf32>
    %168 = vector.extract_strided_slice %167 {offsets = [0, 0], sizes = [2, 96], strides = [1, 1]} : vector<2x128xf32> to vector<2x96xf32>
    %169 = arith.negf %168 : vector<2x96xf32>
    %170 = math.exp %169 : vector<2x96xf32>
    %cst_55 = arith.constant 1.000000e+00 : f32
    %171 = vector.broadcast %cst_55 : f32 to vector<2x96xf32>
    %172 = arith.addf %171, %170 : vector<2x96xf32>
    %173 = arith.divf %171, %172 : vector<2x96xf32>
    %174 = vector.extract_strided_slice %167 {offsets = [0, 96], sizes = [2, 32], strides = [1, 1]} : vector<2x128xf32> to vector<2x32xf32>
    %175 = math.tanh %174 : vector<2x32xf32>
    %176 = vector.extract_strided_slice %173 {offsets = [0, 0], sizes = [2, 32], strides = [1, 1]} : vector<2x96xf32> to vector<2x32xf32>
    %177 = vector.extract_strided_slice %173 {offsets = [0, 32], sizes = [2, 32], strides = [1, 1]} : vector<2x96xf32> to vector<2x32xf32>
    %178 = vector.extract_strided_slice %173 {offsets = [0, 64], sizes = [2, 32], strides = [1, 1]} : vector<2x96xf32> to vector<2x32xf32>
    %179 = arith.mulf %177, %160 : vector<2x32xf32>
    %180 = arith.mulf %176, %175 : vector<2x32xf32>
    %181 = arith.addf %179, %180 : vector<2x32xf32>
    %182 = math.tanh %181 : vector<2x32xf32>
    %183 = arith.mulf %178, %182 : vector<2x32xf32>
    %c0_56 = arith.constant 0 : index
    %c224 = arith.constant 224 : index
    %184 = vector.load %arg4[%c0_56, %c224] : memref<2x256xf32, #tpu.memory_space<vmem>>, vector<2x32xf32>
    tpu.vector_store %arg4[%c0_56, %c224], %183 {strides = array<i32>} : memref<2x256xf32, #tpu.memory_space<vmem>>, vector<2x32xf32>,
    %c0_57 = arith.constant 0 : index
    %c0_58 = arith.constant 0 : index
    %185 = vector.load %arg5[%c0_57, %c0_58] : memref<2x32xf32, #tpu.memory_space<vmem>>, vector<2x32xf32>
    tpu.vector_store %arg5[%c0_57, %c0_58], %183 {strides = array<i32>} : memref<2x32xf32, #tpu.memory_space<vmem>>, vector<2x32xf32>,
    %c0_59 = arith.constant 0 : index
    %c0_60 = arith.constant 0 : index
    %186 = vector.load %arg6[%c0_59, %c0_60] : memref<2x32xf32, #tpu.memory_space<vmem>>, vector<2x32xf32>
    tpu.vector_store %arg6[%c0_59, %c0_60], %181 {strides = array<i32>} : memref<2x32xf32, #tpu.memory_space<vmem>>, vector<2x32xf32>,
    return
  }
}

</mosaic_0001>

<llo_original>
// kernel: rnn_encoder_forward.1
$region0: #{rnn_encoder_forward.1}
  #allocation0 [shape = 'u32[]', space=smem, size = 0x4, offset = 0x4, fixed_abs, tag = 'smem constant byte address 0x4 - core index']
  #allocation1 [shape = 'u32[144,128]{1,0:T(1,128)}', space=vmem, size = 0x12000, scoped, tag = 'internal scratch']
  #allocation2 [shape = 'f32[2,8,128]{2,1,0:T(8,128)}', space=vmem, size = 0x2000, scoped, tag = 'scratch operand']
  %s0 = inlined_call_operand.vmem [shape: f32[16,4], index: 0, kind: input, shape index: {}]
  %s1 = inlined_call_operand.vmem [shape: f32[4,128], index: 1, kind: input, shape index: {}]
  %s2 = inlined_call_operand.hbm [shape: f32[32,128], index: 2, kind: input, shape index: {}]
  %s3 = inlined_call_operand.vmem [shape: f32[1,128], index: 3, kind: input, shape index: {}]
  %s4 = inlined_call_operand.vmem [shape: f32[2,256], index: 4, kind: output, shape index: {0}]
  %s5 = inlined_call_operand.hbm [shape: f32[2,32], index: 5, kind: output, shape index: {1}]
  %s6 = inlined_call_operand.hbm [shape: f32[2,32], index: 6, kind: output, shape index: {2}]
  %7 = xla_tuple %s4, %s5, %s6
  %s8 = sld [smem:[#allocation0]]
  $region46: #{rnn_encoder_forward.1} parent=0
    _
  %s10 = ssub.s32 1, %s8
  %s11 = scalar_select 0, %s10, %s8
  $region1: #{rnn_encoder_forward.1} parent=0
    #allocation3 [shape = 'u8[16384]{0}', space=vmem, size = 0x4000, scoped, tag = 'input window, operand 2, single buffered']
    #allocation4 [shape = 's32[1]{0}', space=sflag, size = 0x4, scoped, tag = 'scoped memory for rnn_encoder_forward.1']
    #allocation5 [shape = 's32[1]{0}', space=sflag, size = 0x4, scoped, tag = 'scoped memory for rnn_encoder_forward.1']
    #allocation6 [shape = 'u8[1024]{0}', space=vmem, size = 0x400, scoped, tag = 'output window, operand 1, single buffered']
    #allocation7 [shape = 'u8[1024]{0}', space=vmem, size = 0x400, scoped, tag = 'output window, operand 2, single buffered']
    #allocation8 [shape = 's32[1]{0}', space=sflag, size = 0x4, scoped, tag = 'scoped memory for rnn_encoder_forward.1']
    %12 = vsyncpa [#allocation4], 0
    %13 = vsyncpa [#allocation5], 0
    %14 = vsyncpa [#allocation8], 0
    // Predicated region
    $region2: #{rnn_encoder_forward.1} parent=1 // pred_check
      _
    $region3: #{rnn_encoder_forward.1} parent=1 // pred_check_branch
      %16 = sbr.rel (0) target = $region5
    $region4: #{rnn_encoder_forward.1} parent=1 // pred_region
      _
    $region5: #{rnn_encoder_forward.1} parent=1 // pred_fallthru
      _
    // Predicated region
    $region6: #{rnn_encoder_forward.1} parent=1 // pred_check
      _
    $region7: #{rnn_encoder_forward.1} parent=1 // pred_check_branch
      %18 = sbr.rel (0) target = $region9
    $region8: #{rnn_encoder_forward.1} parent=1 // pred_region
      _
    $region9: #{rnn_encoder_forward.1} parent=1 // pred_fallthru
      _
    // Predicated region
    $region10: #{rnn_encoder_forward.1} parent=1 // pred_check
      _
    $region11: #{rnn_encoder_forward.1} parent=1 // pred_check_branch
      %20 = sbr.rel (0) target = $region13
    $region12: #{rnn_encoder_forward.1} parent=1 // pred_region
      %s22 = ssub.s32 512, 512
      %23 = vsyncadd [#allocation4], %s22
      %s24 = sshll.u32 [#allocation3], 4
      %s25 = int_to_ptr.vmem [resolvable:$true] %s24
      %30 = dma.hbm_to_vmem [thread:$0]  %s2, 512, %s25, [#allocation4], 128, 128, 8
    $region13: #{rnn_encoder_forward.1} parent=1 // pred_fallthru
      _
    // Predicated region
    $region14: #{rnn_encoder_forward.1} parent=1 // pred_check
      _
    $region15: #{rnn_encoder_forward.1} parent=1 // pred_check_branch
      %32 = sbr.rel (0) target = $region17
    $region16: #{rnn_encoder_forward.1} parent=1 // pred_region
      _
    $region17: #{rnn_encoder_forward.1} parent=1 // pred_fallthru
      _
    // Predicated region
    $region18: #{rnn_encoder_forward.1} parent=1 // pred_check
      _
    $region19: #{rnn_encoder_forward.1} parent=1 // pred_check_branch
      %34 = sbr.rel (0) target = $region21
    $region20: #{rnn_encoder_forward.1} parent=1 // pred_region
      %35 = dma.done [#allocation4], 512
    $region21: #{rnn_encoder_forward.1} parent=1 // pred_fallthru
      _
    %v36 = vld [vmem:[#allocation3] sm:$0xff]
    %v37 = vld [vmem:[#allocation3 + $0x8] sm:$0xff]
    %v38 = vld [vmem:[#allocation3 + $0x10] sm:$0xff]
    %v39 = vld [vmem:[#allocation3 + $0x18] sm:$0xff]
    %v40 = vld [vmem:[%s0] sm:$0xff]
    %v41 = vld [vmem:[%s0 + $0x8] sm:$0xff]
    %v42 = vld [vmem:[%s1] sm:$0xf]
    %v43 = vld [vmem:[%s3] sm:$0x1]
    %v45 = vlaneseq
    %v46 = vshrl.u32 %v45, 7
    %v47 = vsub.s32 0, %v46
    %v48 = vrot.slane %v43, %v47
    %vm50 = vcmask 31744
    %v52 = vsel %vm50, %v40, 0
    %v55 = vsel %vm50, %v41, 0
    %vm57 = vcmask 1043456
    %v59 = vsel %vm57, %v42, 0
    %61 = vmatprep.subr.mxu0 0.0
    %62 = vmatpush1.msra.mxu0 0.0
    %63 = vmatprep.subr.mxu0 0.0
    %64 = vmatpush1.msra.mxu0 0.0
    %65 = vmatprep.subr.mxu0 0.0
    %66 = vmatpush1.msra.mxu0 0.0
    %67 = vmatprep.subr.mxu0 0.0
    %68 = vmatpush1.msra.mxu0 0.0
    %69 = vmatprep.subr.mxu0 0.0
    %70 = vmatpush1.msra.mxu0 0.0
    %71 = vmatprep.subr.mxu0 0.0
    %72 = vmatpush1.msra.mxu0 0.0
    %73 = vmatprep.subr.mxu0 0.0
    %74 = vmatpush1.msra.mxu0 0.0
    %75 = vmatprep.subr.mxu0 0.0
    %76 = vmatpush1.msra.mxu0 0.0
    %77 = vmatprep.subr.mxu0 0.0
    %78 = vmatpush1.msra.mxu0 0.0
    %79 = vmatprep.subr.mxu0 0.0
    %80 = vmatpush1.msra.mxu0 0.0
    %81 = vmatprep.subr.mxu0 0.0
    %82 = vmatpush1.msra.mxu0 0.0
    %83 = vmatprep.subr.mxu0 0.0
    %84 = vmatpush1.msra.mxu0 0.0
    %85 = vmatprep.subr.mxu0 0.0
    %86 = vmatpush1.msra.mxu0 0.0
    %87 = vmatprep.subr.mxu0 0.0
    %88 = vmatpush1.msra.mxu0 0.0
    %89 = vmatprep.subr.mxu0 0.0
    %90 = vmatpush1.msra.mxu0 0.0
    %91 = vmatprep.subr.mxu0 0.0
    %92 = vmatpush1.msra.mxu0 %v59
    %93 = vmatprep.subr.mxu0 0.0
    %94 = vmatpush2.msra.mxu0 0.0
    %95 = vmatprep.subr.mxu0 0.0
    %96 = vmatpush2.msra.mxu0 0.0
    %97 = vmatprep.subr.mxu0 0.0
    %98 = vmatpush2.msra.mxu0 0.0
    %99 = vmatprep.subr.mxu0 0.0
    %100 = vmatpush2.msra.mxu0 0.0
    %101 = vmatprep.subr.mxu0 0.0
    %102 = vmatpush2.msra.mxu0 0.0
    %103 = vmatprep.subr.mxu0 0.0
    %104 = vmatpush2.msra.mxu0 0.0
    %105 = vmatprep.subr.mxu0 0.0
    %106 = vmatpush2.msra.mxu0 0.0
    %107 = vmatprep.subr.mxu0 0.0
    %108 = vmatpush2.msra.mxu0 0.0
    %109 = vmatprep.subr.mxu0 0.0
    %110 = vmatpush2.msra.mxu0 0.0
    %111 = vmatprep.subr.mxu0 0.0
    %112 = vmatpush2.msra.mxu0 0.0
    %113 = vmatprep.subr.mxu0 0.0
    %114 = vmatpush2.msra.mxu0 0.0
    %115 = vmatprep.subr.mxu0 0.0
    %116 = vmatpush2.msra.mxu0 0.0
    %117 = vmatprep.subr.mxu0 0.0
    %118 = vmatpush2.msra.mxu0 0.0
    %119 = vmatprep.subr.mxu0 0.0
    %120 = vmatpush2.msra.mxu0 0.0
    %121 = vmatprep.subr.mxu0 0.0
    %122 = vmatpush2.msra.mxu0 0.0
    %123 = vmatprep.subr.mxu0 0.0
    %124 = vmatpush2.msra.mxu0 0.0
    %125 = vmatprep.mubr.f32.mxu0 0.0
    %126 = vmatmul.mubr.f32.gmra.mxu0 %v52
    %v127 = vpop.f32.mrf.mxu0
    %v128 = vadd.f32 %v48, %v127
    %v129 = vpop.f32.mrf.mxu0
    %130 = vmatprep.mubr.f32.mxu0 0.0
    %131 = vmatmul.mubr.f32.gmra.mxu0 %v55
    %v132 = vpop.f32.mrf.mxu0
    %v133 = vadd.f32 %v48, %v132
    %v134 = vpop.f32.mrf.mxu0
    %135 = vdwg.mxu0
    %136 = vst [vmem:[#allocation2] sm:$0xff] %v128
    %s137 = scalar_lea.vmem [#allocation2], 8
    %138 = vst [vmem:[%s137] sm:$0xff] %v133
    %v139 = vld [vmem:[#allocation2] sm:$0x1]
    %v140 = vld [vmem:[#allocation2 + $0x8] sm:$0x1]
    %vm141 = vcmask 261120
    %v143 = vsel %vm141, 0.0, 0
    %145 = vmatprep.subr.mxu0 0.0
    %146 = vmatpush1.msra.mxu0 0.0
    %147 = vmatprep.subr.mxu0 0.0
    %148 = vmatpush1.msra.mxu0 0.0
    %149 = vmatprep.subr.mxu0 0.0
    %150 = vmatpush1.msra.mxu0 0.0
    %151 = vmatprep.subr.mxu0 0.0
    %152 = vmatpush1.msra.mxu0 0.0
    %153 = vmatprep.subr.mxu0 0.0
    %154 = vmatpush1.msra.mxu0 0.0
    %155 = vmatprep.subr.mxu0 0.0
    %156 = vmatpush1.msra.mxu0 0.0
    %157 = vmatprep.subr.mxu0 0.0
    %158 = vmatpush1.msra.mxu0 0.0
    %159 = vmatprep.subr.mxu0 0.0
    %160 = vmatpush1.msra.mxu0 0.0
    %161 = vmatprep.subr.mxu0 0.0
    %162 = vmatpush1.msra.mxu0 0.0
    %163 = vmatprep.subr.mxu0 0.0
    %164 = vmatpush1.msra.mxu0 0.0
    %165 = vmatprep.subr.mxu0 0.0
    %166 = vmatpush1.msra.mxu0 0.0
    %167 = vmatprep.subr.mxu0 0.0
    %168 = vmatpush1.msra.mxu0 0.0
    %169 = vmatprep.subr.mxu0 0.0
    %170 = vmatpush1.msra.mxu0 %v39
    %171 = vmatprep.subr.mxu0 0.0
    %172 = vmatpush1.msra.mxu0 %v38
    %173 = vmatprep.subr.mxu0 0.0
    %174 = vmatpush1.msra.mxu0 %v37
    %175 = vmatprep.subr.mxu0 0.0
    %176 = vmatpush1.msra.mxu0 %v36
    %177 = vmatprep.subr.mxu0 0.0
    %178 = vmatpush2.msra.mxu0 0.0
    %179 = vmatprep.subr.mxu0 0.0
    %180 = vmatpush2.msra.mxu0 0.0
    %181 = vmatprep.subr.mxu0 0.0
    %182 = vmatpush2.msra.mxu0 0.0
    %183 = vmatprep.subr.mxu0 0.0
    %184 = vmatpush2.msra.mxu0 0.0
    %185 = vmatprep.subr.mxu0 0.0
    %186 = vmatpush2.msra.mxu0 0.0
    %187 = vmatprep.subr.mxu0 0.0
    %188 = vmatpush2.msra.mxu0 0.0
    %189 = vmatprep.subr.mxu0 0.0
    %190 = vmatpush2.msra.mxu0 0.0
    %191 = vmatprep.subr.mxu0 0.0
    %192 = vmatpush2.msra.mxu0 0.0
    %193 = vmatprep.subr.mxu0 0.0
    %194 = vmatpush2.msra.mxu0 0.0
    %195 = vmatprep.subr.mxu0 0.0
    %196 = vmatpush2.msra.mxu0 0.0
    %197 = vmatprep.subr.mxu0 0.0
    %198 = vmatpush2.msra.mxu0 0.0
    %199 = vmatprep.subr.mxu0 0.0
    %200 = vmatpush2.msra.mxu0 0.0
    %201 = vmatprep.subr.mxu0 0.0
    %202 = vmatpush2.msra.mxu0 0.0
    %203 = vmatprep.subr.mxu0 0.0
    %204 = vmatpush2.msra.mxu0 0.0
    %205 = vmatprep.subr.mxu0 0.0
    %206 = vmatpush2.msra.mxu0 0.0
    %207 = vmatprep.subr.mxu0 0.0
    %208 = vmatpush2.msra.mxu0 0.0
    %209 = vmatprep.mubr.f32.mxu0 0.0
    %210 = vmatmul.mubr.f32.gmra.mxu0 %v143
    %v211 = vpop.f32.mrf.mxu0
    %v212 = vadd.f32 0.0, %v211
    %v213 = vpop.f32.mrf.mxu0
    %214 = vdwg.mxu0
    %v216 = vrot.slane %v212, 1
    %v219 = vadd.f32 %v139, %v212
    %v220 = vadd.f32 %v140, %v216
    %v221 = vxor.u32 %v219, 2147483648
    %v222 = vxor.u32 %v220, 2147483648
    %v223 = vmul.f32 %v221, 1.442695
    %v224 = vpow.pop %v223
    %v225 = vmul.f32 %v222, 1.442695
    %v226 = vpow.pop %v225
    %v227 = vadd.f32 %v224, 1.0
    %v228 = vadd.f32 %v226, 1.0
    %v229 = vrcp.pop %v227
    %v230 = vmul.f32 1.0, %v229
    %v231 = vrcp.pop %v228
    %v232 = vmul.f32 1.0, %v231
    %v233 = vtanh.pop %v219
    %v234 = vtanh.pop %v220
    %v235 = vmul.f32 %v230, 0.0
    %v236 = vmul.f32 %v232, 0.0
    %239 = vrot.lane.b32.xlu0 %v233, 32
    %v240 = vpop.permute.xlu0 %239
    %241 = vrot.lane.b32.xlu0 %v234, 32
    %v242 = vpop.permute.xlu0 %241
    %v245 = vmul.f32 %v230, %v240
    %v246 = vmul.f32 %v232, %v242
    %249 = vrot.lane.b32.xlu0 %v245, 32
    %v250 = vpop.permute.xlu0 %249
    %251 = vrot.lane.b32.xlu0 %v246, 32
    %v252 = vpop.permute.xlu0 %251
    %v255 = vadd.f32 %v235, %v250
    %v256 = vadd.f32 %v236, %v252
    %v257 = vtanh.pop %v255
    %v258 = vtanh.pop %v256
    %261 = vrot.lane.b32.xlu0 %v257, 32
    %v262 = vpop.permute.xlu0 %261
    %263 = vrot.lane.b32.xlu0 %v258, 32
    %v264 = vpop.permute.xlu0 %263
    %v267 = vmul.f32 %v230, %v262
    %v268 = vmul.f32 %v232, %v264
    %v272 = vunpack.c.l.s4 1983009808
    %v273 = vunpack.c.0.s8 %v272
    %v274 = vlaneseq
    %v275 = vshrl.u32 %v274, 7
    %v276 = vsub.s32 %v273, %v275
    %v277 = vrot.slane %v267, %v276
    %v279 = vunpack.c.l.s4 1983009808
    %v280 = vunpack.c.0.s8 %v279
    %v281 = vlaneseq
    %v282 = vshrl.u32 %v281, 7
    %v283 = vsub.s32 %v280, %v282
    %v284 = vrot.slane %v268, %v283
    %vm285 = vcmask 1044484
    %v286 = vsel %vm285, %v277, %v277
    %vm287 = vcmask 1046534
    %v288 = vsel %vm287, %v277, %v286
    %v289 = vrot.slane %v284, 7
    %vm290 = vcmask 1041409
    %v291 = vsel %vm290, %v289, %v288
    %vm292 = vcmask 1043459
    %v293 = vsel %vm292, %v289, %v291
    %vm294 = vcmask 1045509
    %v295 = vsel %vm294, %v289, %v293
    %vm296 = vcmask 1047559
    %v297 = vsel %vm296, %v289, %v295
    %298 = vrot.lane.b32.xlu0 %v297, 64
    %v299 = vpop.permute.xlu0 %298
    %vm301 = vcmask 254976
    %302 = vst.msk [vmem:[%s4] sm:$0x3] %vm301, %v299
    %v303 = vld [vmem:[#allocation2 + $0x1] sm:$0x1]
    %v304 = vld [vmem:[#allocation2 + $0x9] sm:$0x1]
    %v305 = vrot.slane %v268, 7
    %v306 = vsel %vm290, %v305, %v267
    %307 = vrot.lane.b32.xlu0 %v306, 64
    %v308 = vpop.permute.xlu0 %307
    %v309 = vsel %vm141, %v308, 0
    %311 = vmatprep.subr.mxu0 0.0
    %312 = vmatpush1.msra.mxu0 0.0
    %313 = vmatprep.subr.mxu0 0.0
    %314 = vmatpush1.msra.mxu0 0.0
    %315 = vmatprep.subr.mxu0 0.0
    %316 = vmatpush1.msra.mxu0 0.0
    %317 = vmatprep.subr.mxu0 0.0
    %318 = vmatpush1.msra.mxu0 0.0
    %319 = vmatprep.subr.mxu0 0.0
    %320 = vmatpush1.msra.mxu0 0.0
    %321 = vmatprep.subr.mxu0 0.0
    %322 = vmatpush1.msra.mxu0 0.0
    %323 = vmatprep.subr.mxu0 0.0
    %324 = vmatpush1.msra.mxu0 0.0
    %325 = vmatprep.subr.mxu0 0.0
    %326 = vmatpush1.msra.mxu0 0.0
    %327 = vmatprep.subr.mxu0 0.0
    %328 = vmatpush1.msra.mxu0 0.0
    %329 = vmatprep.subr.mxu0 0.0
    %330 = vmatpush1.msra.mxu0 0.0
    %331 = vmatprep.subr.mxu0 0.0
    %332 = vmatpush1.msra.mxu0 0.0
    %333 = vmatprep.subr.mxu0 0.0
    %334 = vmatpush1.msra.mxu0 0.0
    %335 = vmatprep.subr.mxu0 0.0
    %336 = vmatpush1.msra.mxu0 %v39
    %337 = vmatprep.subr.mxu0 0.0
    %338 = vmatpush1.msra.mxu0 %v38
    %339 = vmatprep.subr.mxu0 0.0
    %340 = vmatpush1.msra.mxu0 %v37
    %341 = vmatprep.subr.mxu0 0.0
    %342 = vmatpush1.msra.mxu0 %v36
    %343 = vmatprep.subr.mxu0 0.0
    %344 = vmatpush2.msra.mxu0 0.0
    %345 = vmatprep.subr.mxu0 0.0
    %346 = vmatpush2.msra.mxu0 0.0
    %347 = vmatprep.subr.mxu0 0.0
    %348 = vmatpush2.msra.mxu0 0.0
    %349 = vmatprep.subr.mxu0 0.0
    %350 = vmatpush2.msra.mxu0 0.0
    %351 = vmatprep.subr.mxu0 0.0
    %352 = vmatpush2.msra.mxu0 0.0
    %353 = vmatprep.subr.mxu0 0.0
    %354 = vmatpush2.msra.mxu0 0.0
    %355 = vmatprep.subr.mxu0 0.0
    %356 = vmatpush2.msra.mxu0 0.0
    %357 = vmatprep.subr.mxu0 0.0
    %358 = vmatpush2.msra.mxu0 0.0
    %359 = vmatprep.subr.mxu0 0.0
    %360 = vmatpush2.msra.mxu0 0.0
    %361 = vmatprep.subr.mxu0 0.0
    %362 = vmatpush2.msra.mxu0 0.0
    %363 = vmatprep.subr.mxu0 0.0
    %364 = vmatpush2.msra.mxu0 0.0
    %365 = vmatprep.subr.mxu0 0.0
    %366 = vmatpush2.msra.mxu0 0.0
    %367 = vmatprep.subr.mxu0 0.0
    %368 = vmatpush2.msra.mxu0 0.0
    %369 = vmatprep.subr.mxu0 0.0
    %370 = vmatpush2.msra.mxu0 0.0
    %371 = vmatprep.subr.mxu0 0.0
    %372 = vmatpush2.msra.mxu0 0.0
    %373 = vmatprep.subr.mxu0 0.0
    %374 = vmatpush2.msra.mxu0 0.0
    %375 = vmatprep.mubr.f32.mxu0 0.0
    %376 = vmatmul.mubr.f32.gmra.mxu0 %v309
    %v377 = vpop.f32.mrf.mxu0
    %v378 = vadd.f32 0.0, %v377
    %v379 = vpop.f32.mrf.mxu0
    %380 = vdwg.mxu0
    %v382 = vrot.slane %v378, 1
    %v385 = vadd.f32 %v303, %v378
    %v386 = vadd.f32 %v304, %v382
    %v387 = vxor.u32 %v385, 2147483648
    %v388 = vxor.u32 %v386, 2147483648
    %v389 = vmul.f32 %v387, 1.442695
    %v390 = vpow.pop %v389
    %v391 = vmul.f32 %v388, 1.442695
    %v392 = vpow.pop %v391
    %v393 = vadd.f32 %v390, 1.0
    %v394 = vadd.f32 %v392, 1.0
    %v395 = vrcp.pop %v393
    %v396 = vmul.f32 1.0, %v395
    %v397 = vrcp.pop %v394
    %v398 = vmul.f32 1.0, %v397
    %v399 = vtanh.pop %v385
    %v400 = vtanh.pop %v386
    %v401 = vmul.f32 %v396, %v255
    %v402 = vmul.f32 %v398, %v256
    %405 = vrot.lane.b32.xlu0 %v399, 32
    %v406 = vpop.permute.xlu0 %405
    %407 = vrot.lane.b32.xlu0 %v400, 32
    %v408 = vpop.permute.xlu0 %407
    %v411 = vmul.f32 %v396, %v406
    %v412 = vmul.f32 %v398, %v408
    %415 = vrot.lane.b32.xlu0 %v411, 32
    %v416 = vpop.permute.xlu0 %415
    %417 = vrot.lane.b32.xlu0 %v412, 32
    %v418 = vpop.permute.xlu0 %417
    %v421 = vadd.f32 %v401, %v416
    %v422 = vadd.f32 %v402, %v418
    %v423 = vtanh.pop %v421
    %v424 = vtanh.pop %v422
    %427 = vrot.lane.b32.xlu0 %v423, 32
    %v428 = vpop.permute.xlu0 %427
    %429 = vrot.lane.b32.xlu0 %v424, 32
    %v430 = vpop.permute.xlu0 %429
    %v433 = vmul.f32 %v396, %v428
    %v434 = vmul.f32 %v398, %v430
    %v438 = vunpack.c.l.s4 1983009808
    %v439 = vunpack.c.0.s8 %v438
    %v440 = vlaneseq
    %v441 = vshrl.u32 %v440, 7
    %v442 = vsub.s32 %v439, %v441
    %v443 = vrot.slane %v433, %v442
    %v445 = vunpack.c.l.s4 1983009808
    %v446 = vunpack.c.0.s8 %v445
    %v447 = vlaneseq
    %v448 = vshrl.u32 %v447, 7
    %v449 = vsub.s32 %v446, %v448
    %v450 = vrot.slane %v434, %v449
    %v451 = vsel %vm285, %v443, %v443
    %v452 = vsel %vm287, %v443, %v451
    %v453 = vrot.slane %v450, 7
    %v454 = vsel %vm290, %v453, %v452
    %v455 = vsel %vm292, %v453, %v454
    %v456 = vsel %vm294, %v453, %v455
    %v457 = vsel %vm296, %v453, %v456
    %458 = vrot.lane.b32.xlu0 %v457, 96
    %v459 = vpop.permute.xlu0 %458
    %vm461 = vcmask 517376
    %462 = vst.msk [vmem:[%s4] sm:$0x3] %vm461, %v459
    %v463 = vld [vmem:[#allocation2 + $0x2] sm:$0x1]
    %v464 = vld [vmem:[#allocation2 + $0xa] sm:$0x1]
    %v465 = vrot.slane %v434, 7
    %v466 = vsel %vm290, %v465, %v433
    %467 = vrot.lane.b32.xlu0 %v466, 64
    %v468 = vpop.permute.xlu0 %467
    %v469 = vsel %vm141, %v468, 0
    %471 = vmatprep.subr.mxu0 0.0
    %472 = vmatpush1.msra.mxu0 0.0
    %473 = vmatprep.subr.mxu0 0.0
    %474 = vmatpush1.msra.mxu0 0.0
    %475 = vmatprep.subr.mxu0 0.0
    %476 = vmatpush1.msra.mxu0 0.0
    %477 = vmatprep.subr.mxu0 0.0
    %478 = vmatpush1.msra.mxu0 0.0
    %479 = vmatprep.subr.mxu0 0.0
    %480 = vmatpush1.msra.mxu0 0.0
    %481 = vmatprep.subr.mxu0 0.0
    %482 = vmatpush1.msra.mxu0 0.0
    %483 = vmatprep.subr.mxu0 0.0
    %484 = vmatpush1.msra.mxu0 0.0
    %485 = vmatprep.subr.mxu0 0.0
    %486 = vmatpush1.msra.mxu0 0.0
    %487 = vmatprep.subr.mxu0 0.0
    %488 = vmatpush1.msra.mxu0 0.0
    %489 = vmatprep.subr.mxu0 0.0
    %490 = vmatpush1.msra.mxu0 0.0
    %491 = vmatprep.subr.mxu0 0.0
    %492 = vmatpush1.msra.mxu0 0.0
    %493 = vmatprep.subr.mxu0 0.0
    %494 = vmatpush1.msra.mxu0 0.0
    %495 = vmatprep.subr.mxu0 0.0
    %496 = vmatpush1.msra.mxu0 %v39
    %497 = vmatprep.subr.mxu0 0.0
    %498 = vmatpush1.msra.mxu0 %v38
    %499 = vmatprep.subr.mxu0 0.0
    %500 = vmatpush1.msra.mxu0 %v37
    %501 = vmatprep.subr.mxu0 0.0
    %502 = vmatpush1.msra.mxu0 %v36
    %503 = vmatprep.subr.mxu0 0.0
    %504 = vmatpush2.msra.mxu0 0.0
    %505 = vmatprep.subr.mxu0 0.0
    %506 = vmatpush2.msra.mxu0 0.0
    %507 = vmatprep.subr.mxu0 0.0
    %508 = vmatpush2.msra.mxu0 0.0
    %509 = vmatprep.subr.mxu0 0.0
    %510 = vmatpush2.msra.mxu0 0.0
    %511 = vmatprep.subr.mxu0 0.0
    %512 = vmatpush2.msra.mxu0 0.0
    %513 = vmatprep.subr.mxu0 0.0
    %514 = vmatpush2.msra.mxu0 0.0
    %515 = vmatprep.subr.mxu0 0.0
    %516 = vmatpush2.msra.mxu0 0.0
    %517 = vmatprep.subr.mxu0 0.0
    %518 = vmatpush2.msra.mxu0 0.0
    %519 = vmatprep.subr.mxu0 0.0
    %520 = vmatpush2.msra.mxu0 0.0
    %521 = vmatprep.subr.mxu0 0.0
    %522 = vmatpush2.msra.mxu0 0.0
    %523 = vmatprep.subr.mxu0 0.0
    %524 = vmatpush2.msra.mxu0 0.0
    %525 = vmatprep.subr.mxu0 0.0
    %526 = vmatpush2.msra.mxu0 0.0
    %527 = vmatprep.subr.mxu0 0.0
    %528 = vmatpush2.msra.mxu0 0.0
    %529 = vmatprep.subr.mxu0 0.0
    %530 = vmatpush2.msra.mxu0 0.0
    %531 = vmatprep.subr.mxu0 0.0
    %532 = vmatpush2.msra.mxu0 0.0
    %533 = vmatprep.subr.mxu0 0.0
    %534 = vmatpush2.msra.mxu0 0.0
    %535 = vmatprep.mubr.f32.mxu0 0.0
    %536 = vmatmul.mubr.f32.gmra.mxu0 %v469
    %v537 = vpop.f32.mrf.mxu0
    %v538 = vadd.f32 0.0, %v537
    %v539 = vpop.f32.mrf.mxu0
    %540 = vdwg.mxu0
    %v542 = vrot.slane %v538, 1
    %v545 = vadd.f32 %v463, %v538
    %v546 = vadd.f32 %v464, %v542
    %v547 = vxor.u32 %v545, 2147483648
    %v548 = vxor.u32 %v546, 2147483648
    %v549 = vmul.f32 %v547, 1.442695
    %v550 = vpow.pop %v549
    %v551 = vmul.f32 %v548, 1.442695
    %v552 = vpow.pop %v551
    %v553 = vadd.f32 %v550, 1.0
    %v554 = vadd.f32 %v552, 1.0
    %v555 = vrcp.pop %v553
    %v556 = vmul.f32 1.0, %v555
    %v557 = vrcp.pop %v554
    %v558 = vmul.f32 1.0, %v557
    %v559 = vtanh.pop %v545
    %v560 = vtanh.pop %v546
    %v561 = vmul.f32 %v556, %v421
    %v562 = vmul.f32 %v558, %v422
    %565 = vrot.lane.b32.xlu0 %v559, 32
    %v566 = vpop.permute.xlu0 %565
    %567 = vrot.lane.b32.xlu0 %v560, 32
    %v568 = vpop.permute.xlu0 %567
    %v571 = vmul.f32 %v556, %v566
    %v572 = vmul.f32 %v558, %v568
    %575 = vrot.lane.b32.xlu0 %v571, 32
    %v576 = vpop.permute.xlu0 %575
    %577 = vrot.lane.b32.xlu0 %v572, 32
    %v578 = vpop.permute.xlu0 %577
    %v581 = vadd.f32 %v561, %v576
    %v582 = vadd.f32 %v562, %v578
    %v583 = vtanh.pop %v581
    %v584 = vtanh.pop %v582
    %587 = vrot.lane.b32.xlu0 %v583, 32
    %v588 = vpop.permute.xlu0 %587
    %589 = vrot.lane.b32.xlu0 %v584, 32
    %v590 = vpop.permute.xlu0 %589
    %v593 = vmul.f32 %v556, %v588
    %v594 = vmul.f32 %v558, %v590
    %v598 = vunpack.c.l.s4 1983009808
    %v599 = vunpack.c.0.s8 %v598
    %v600 = vlaneseq
    %v601 = vshrl.u32 %v600, 7
    %v602 = vsub.s32 %v599, %v601
    %v603 = vrot.slane %v593, %v602
    %v605 = vunpack.c.l.s4 1983009808
    %v606 = vunpack.c.0.s8 %v605
    %v607 = vlaneseq
    %v608 = vshrl.u32 %v607, 7
    %v609 = vsub.s32 %v606, %v608
    %v610 = vrot.slane %v594, %v609
    %v611 = vsel %vm285, %v603, %v603
    %v612 = vsel %vm287, %v603, %v611
    %v613 = vrot.slane %v610, 7
    %v614 = vsel %vm290, %v613, %v612
    %v615 = vsel %vm292, %v613, %v614
    %v616 = vsel %vm294, %v613, %v615
    %v617 = vsel %vm296, %v613, %v616
    %vm619 = vcmask 779776
    %620 = vst.msk [vmem:[%s4] sm:$0x3] %vm619, %v617
    %v621 = vld [vmem:[#allocation2 + $0x3] sm:$0x1]
    %v622 = vld [vmem:[#allocation2 + $0xb] sm:$0x1]
    %v623 = vrot.slane %v594, 7
    %v624 = vsel %vm290, %v623, %v593
    %625 = vrot.lane.b32.xlu0 %v624, 64
    %v626 = vpop.permute.xlu0 %625
    %v627 = vsel %vm141, %v626, 0
    %629 = vmatprep.subr.mxu0 0.0
    %630 = vmatpush1.msra.mxu0 0.0
    %631 = vmatprep.subr.mxu0 0.0
    %632 = vmatpush1.msra.mxu0 0.0
    %633 = vmatprep.subr.mxu0 0.0
    %634 = vmatpush1.msra.mxu0 0.0
    %635 = vmatprep.subr.mxu0 0.0
    %636 = vmatpush1.msra.mxu0 0.0
    %637 = vmatprep.subr.mxu0 0.0
    %638 = vmatpush1.msra.mxu0 0.0
    %639 = vmatprep.subr.mxu0 0.0
    %640 = vmatpush1.msra.mxu0 0.0
    %641 = vmatprep.subr.mxu0 0.0
    %642 = vmatpush1.msra.mxu0 0.0
    %643 = vmatprep.subr.mxu0 0.0
    %644 = vmatpush1.msra.mxu0 0.0
    %645 = vmatprep.subr.mxu0 0.0
    %646 = vmatpush1.msra.mxu0 0.0
    %647 = vmatprep.subr.mxu0 0.0
    %648 = vmatpush1.msra.mxu0 0.0
    %649 = vmatprep.subr.mxu0 0.0
    %650 = vmatpush1.msra.mxu0 0.0
    %651 = vmatprep.subr.mxu0 0.0
    %652 = vmatpush1.msra.mxu0 0.0
    %653 = vmatprep.subr.mxu0 0.0
    %654 = vmatpush1.msra.mxu0 %v39
    %655 = vmatprep.subr.mxu0 0.0
    %656 = vmatpush1.msra.mxu0 %v38
    %657 = vmatprep.subr.mxu0 0.0
    %658 = vmatpush1.msra.mxu0 %v37
    %659 = vmatprep.subr.mxu0 0.0
    %660 = vmatpush1.msra.mxu0 %v36
    %661 = vmatprep.subr.mxu0 0.0
    %662 = vmatpush2.msra.mxu0 0.0
    %663 = vmatprep.subr.mxu0 0.0
    %664 = vmatpush2.msra.mxu0 0.0
    %665 = vmatprep.subr.mxu0 0.0
    %666 = vmatpush2.msra.mxu0 0.0
    %667 = vmatprep.subr.mxu0 0.0
    %668 = vmatpush2.msra.mxu0 0.0
    %669 = vmatprep.subr.mxu0 0.0
    %670 = vmatpush2.msra.mxu0 0.0
    %671 = vmatprep.subr.mxu0 0.0
    %672 = vmatpush2.msra.mxu0 0.0
    %673 = vmatprep.subr.mxu0 0.0
    %674 = vmatpush2.msra.mxu0 0.0
    %675 = vmatprep.subr.mxu0 0.0
    %676 = vmatpush2.msra.mxu0 0.0
    %677 = vmatprep.subr.mxu0 0.0
    %678 = vmatpush2.msra.mxu0 0.0
    %679 = vmatprep.subr.mxu0 0.0
    %680 = vmatpush2.msra.mxu0 0.0
    %681 = vmatprep.subr.mxu0 0.0
    %682 = vmatpush2.msra.mxu0 0.0
    %683 = vmatprep.subr.mxu0 0.0
    %684 = vmatpush2.msra.mxu0 0.0
    %685 = vmatprep.subr.mxu0 0.0
    %686 = vmatpush2.msra.mxu0 0.0
    %687 = vmatprep.subr.mxu0 0.0
    %688 = vmatpush2.msra.mxu0 0.0
    %689 = vmatprep.subr.mxu0 0.0
    %690 = vmatpush2.msra.mxu0 0.0
    %691 = vmatprep.subr.mxu0 0.0
    %692 = vmatpush2.msra.mxu0 0.0
    %693 = vmatprep.mubr.f32.mxu0 0.0
    %694 = vmatmul.mubr.f32.gmra.mxu0 %v627
    %v695 = vpop.f32.mrf.mxu0
    %v696 = vadd.f32 0.0, %v695
    %v697 = vpop.f32.mrf.mxu0
    %698 = vdwg.mxu0
    %v700 = vrot.slane %v696, 1
    %v703 = vadd.f32 %v621, %v696
    %v704 = vadd.f32 %v622, %v700
    %v705 = vxor.u32 %v703, 2147483648
    %v706 = vxor.u32 %v704, 2147483648
    %v707 = vmul.f32 %v705, 1.442695
    %v708 = vpow.pop %v707
    %v709 = vmul.f32 %v706, 1.442695
    %v710 = vpow.pop %v709
    %v711 = vadd.f32 %v708, 1.0
    %v712 = vadd.f32 %v710, 1.0
    %v713 = vrcp.pop %v711
    %v714 = vmul.f32 1.0, %v713
    %v715 = vrcp.pop %v712
    %v716 = vmul.f32 1.0, %v715
    %v717 = vtanh.pop %v703
    %v718 = vtanh.pop %v704
    %v719 = vmul.f32 %v714, %v581
    %v720 = vmul.f32 %v716, %v582
    %723 = vrot.lane.b32.xlu0 %v717, 32
    %v724 = vpop.permute.xlu0 %723
    %725 = vrot.lane.b32.xlu0 %v718, 32
    %v726 = vpop.permute.xlu0 %725
    %v729 = vmul.f32 %v714, %v724
    %v730 = vmul.f32 %v716, %v726
    %733 = vrot.lane.b32.xlu0 %v729, 32
    %v734 = vpop.permute.xlu0 %733
    %735 = vrot.lane.b32.xlu0 %v730, 32
    %v736 = vpop.permute.xlu0 %735
    %v739 = vadd.f32 %v719, %v734
    %v740 = vadd.f32 %v720, %v736
    %v741 = vtanh.pop %v739
    %v742 = vtanh.pop %v740
    %745 = vrot.lane.b32.xlu0 %v741, 32
    %v746 = vpop.permute.xlu0 %745
    %747 = vrot.lane.b32.xlu0 %v742, 32
    %v748 = vpop.permute.xlu0 %747
    %v751 = vmul.f32 %v714, %v746
    %v752 = vmul.f32 %v716, %v748
    %v756 = vunpack.c.l.s4 1983009808
    %v757 = vunpack.c.0.s8 %v756
    %v758 = vlaneseq
    %v759 = vshrl.u32 %v758, 7
    %v760 = vsub.s32 %v757, %v759
    %v761 = vrot.slane %v751, %v760
    %v763 = vunpack.c.l.s4 1983009808
    %v764 = vunpack.c.0.s8 %v763
    %v765 = vlaneseq
    %v766 = vshrl.u32 %v765, 7
    %v767 = vsub.s32 %v764, %v766
    %v768 = vrot.slane %v752, %v767
    %v769 = vsel %vm285, %v761, %v761
    %v770 = vsel %vm287, %v761, %v769
    %v771 = vrot.slane %v768, 7
    %v772 = vsel %vm290, %v771, %v770
    %v773 = vsel %vm292, %v771, %v772
    %v774 = vsel %vm294, %v771, %v773
    %v775 = vsel %vm296, %v771, %v774
    %776 = vrot.lane.b32.xlu0 %v775, 32
    %v777 = vpop.permute.xlu0 %776
    %vm779 = vcmask 1042176
    %780 = vst.msk [vmem:[%s4] sm:$0x3] %vm779, %v777
    %v781 = vld [vmem:[#allocation2 + $0x4] sm:$0x1]
    %v782 = vld [vmem:[#allocation2 + $0xc] sm:$0x1]
    %v783 = vrot.slane %v752, 7
    %v784 = vsel %vm290, %v783, %v751
    %785 = vrot.lane.b32.xlu0 %v784, 64
    %v786 = vpop.permute.xlu0 %785
    %v787 = vsel %vm141, %v786, 0
    %789 = vmatprep.subr.mxu0 0.0
    %790 = vmatpush1.msra.mxu0 0.0
    %791 = vmatprep.subr.mxu0 0.0
    %792 = vmatpush1.msra.mxu0 0.0
    %793 = vmatprep.subr.mxu0 0.0
    %794 = vmatpush1.msra.mxu0 0.0
    %795 = vmatprep.subr.mxu0 0.0
    %796 = vmatpush1.msra.mxu0 0.0
    %797 = vmatprep.subr.mxu0 0.0
    %798 = vmatpush1.msra.mxu0 0.0
    %799 = vmatprep.subr.mxu0 0.0
    %800 = vmatpush1.msra.mxu0 0.0
    %801 = vmatprep.subr.mxu0 0.0
    %802 = vmatpush1.msra.mxu0 0.0
    %803 = vmatprep.subr.mxu0 0.0
    %804 = vmatpush1.msra.mxu0 0.0
    %805 = vmatprep.subr.mxu0 0.0
    %806 = vmatpush1.msra.mxu0 0.0
    %807 = vmatprep.subr.mxu0 0.0
    %808 = vmatpush1.msra.mxu0 0.0
    %809 = vmatprep.subr.mxu0 0.0
    %810 = vmatpush1.msra.mxu0 0.0
    %811 = vmatprep.subr.mxu0 0.0
    %812 = vmatpush1.msra.mxu0 0.0
    %813 = vmatprep.subr.mxu0 0.0
    %814 = vmatpush1.msra.mxu0 %v39
    %815 = vmatprep.subr.mxu0 0.0
    %816 = vmatpush1.msra.mxu0 %v38
    %817 = vmatprep.subr.mxu0 0.0
    %818 = vmatpush1.msra.mxu0 %v37
    %819 = vmatprep.subr.mxu0 0.0
    %820 = vmatpush1.msra.mxu0 %v36
    %821 = vmatprep.subr.mxu0 0.0
    %822 = vmatpush2.msra.mxu0 0.0
    %823 = vmatprep.subr.mxu0 0.0
    %824 = vmatpush2.msra.mxu0 0.0
    %825 = vmatprep.subr.mxu0 0.0
    %826 = vmatpush2.msra.mxu0 0.0
    %827 = vmatprep.subr.mxu0 0.0
    %828 = vmatpush2.msra.mxu0 0.0
    %829 = vmatprep.subr.mxu0 0.0
    %830 = vmatpush2.msra.mxu0 0.0
    %831 = vmatprep.subr.mxu0 0.0
    %832 = vmatpush2.msra.mxu0 0.0
    %833 = vmatprep.subr.mxu0 0.0
    %834 = vmatpush2.msra.mxu0 0.0
    %835 = vmatprep.subr.mxu0 0.0
    %836 = vmatpush2.msra.mxu0 0.0
    %837 = vmatprep.subr.mxu0 0.0
    %838 = vmatpush2.msra.mxu0 0.0
    %839 = vmatprep.subr.mxu0 0.0
    %840 = vmatpush2.msra.mxu0 0.0
    %841 = vmatprep.subr.mxu0 0.0
    %842 = vmatpush2.msra.mxu0 0.0
    %843 = vmatprep.subr.mxu0 0.0
    %844 = vmatpush2.msra.mxu0 0.0
    %845 = vmatprep.subr.mxu0 0.0
    %846 = vmatpush2.msra.mxu0 0.0
    %847 = vmatprep.subr.mxu0 0.0
    %848 = vmatpush2.msra.mxu0 0.0
    %849 = vmatprep.subr.mxu0 0.0
    %850 = vmatpush2.msra.mxu0 0.0
    %851 = vmatprep.subr.mxu0 0.0
    %852 = vmatpush2.msra.mxu0 0.0
    %853 = vmatprep.mubr.f32.mxu0 0.0
    %854 = vmatmul.mubr.f32.gmra.mxu0 %v787
    %v855 = vpop.f32.mrf.mxu0
    %v856 = vadd.f32 0.0, %v855
    %v857 = vpop.f32.mrf.mxu0
    %858 = vdwg.mxu0
    %v860 = vrot.slane %v856, 1
    %v863 = vadd.f32 %v781, %v856
    %v864 = vadd.f32 %v782, %v860
    %v865 = vxor.u32 %v863, 2147483648
    %v866 = vxor.u32 %v864, 2147483648
    %v867 = vmul.f32 %v865, 1.442695
    %v868 = vpow.pop %v867
    %v869 = vmul.f32 %v866, 1.442695
    %v870 = vpow.pop %v869
    %v871 = vadd.f32 %v868, 1.0
    %v872 = vadd.f32 %v870, 1.0
    %v873 = vrcp.pop %v871
    %v874 = vmul.f32 1.0, %v873
    %v875 = vrcp.pop %v872
    %v876 = vmul.f32 1.0, %v875
    %v877 = vtanh.pop %v863
    %v878 = vtanh.pop %v864
    %v879 = vmul.f32 %v874, %v739
    %v880 = vmul.f32 %v876, %v740
    %883 = vrot.lane.b32.xlu0 %v877, 32
    %v884 = vpop.permute.xlu0 %883
    %885 = vrot.lane.b32.xlu0 %v878, 32
    %v886 = vpop.permute.xlu0 %885
    %v889 = vmul.f32 %v874, %v884
    %v890 = vmul.f32 %v876, %v886
    %893 = vrot.lane.b32.xlu0 %v889, 32
    %v894 = vpop.permute.xlu0 %893
    %895 = vrot.lane.b32.xlu0 %v890, 32
    %v896 = vpop.permute.xlu0 %895
    %v899 = vadd.f32 %v879, %v894
    %v900 = vadd.f32 %v880, %v896
    %v901 = vtanh.pop %v899
    %v902 = vtanh.pop %v900
    %905 = vrot.lane.b32.xlu0 %v901, 32
    %v906 = vpop.permute.xlu0 %905
    %907 = vrot.lane.b32.xlu0 %v902, 32
    %v908 = vpop.permute.xlu0 %907
    %v911 = vmul.f32 %v874, %v906
    %v912 = vmul.f32 %v876, %v908
    %v916 = vunpack.c.l.s4 1983009808
    %v917 = vunpack.c.0.s8 %v916
    %v918 = vlaneseq
    %v919 = vshrl.u32 %v918, 7
    %v920 = vsub.s32 %v917, %v919
    %v921 = vrot.slane %v911, %v920
    %v923 = vunpack.c.l.s4 1983009808
    %v924 = vunpack.c.0.s8 %v923
    %v925 = vlaneseq
    %v926 = vshrl.u32 %v925, 7
    %v927 = vsub.s32 %v924, %v926
    %v928 = vrot.slane %v912, %v927
    %v929 = vsel %vm285, %v921, %v921
    %v930 = vsel %vm287, %v921, %v929
    %v931 = vrot.slane %v928, 7
    %v932 = vsel %vm290, %v931, %v930
    %v933 = vsel %vm292, %v931, %v932
    %v934 = vsel %vm294, %v931, %v933
    %v935 = vsel %vm296, %v931, %v934
    %936 = vrot.lane.b32.xlu0 %v935, 64
    %v937 = vpop.permute.xlu0 %936
    %939 = vst.msk [vmem:[%s4 + $0x2] sm:$0x3] %vm301, %v937
    %v940 = vld [vmem:[#allocation2 + $0x5] sm:$0x1]
    %v941 = vld [vmem:[#allocation2 + $0xd] sm:$0x1]
    %v942 = vrot.slane %v912, 7
    %v943 = vsel %vm290, %v942, %v911
    %944 = vrot.lane.b32.xlu0 %v943, 64
    %v945 = vpop.permute.xlu0 %944
    %v946 = vsel %vm141, %v945, 0
    %948 = vmatprep.subr.mxu0 0.0
    %949 = vmatpush1.msra.mxu0 0.0
    %950 = vmatprep.subr.mxu0 0.0
    %951 = vmatpush1.msra.mxu0 0.0
    %952 = vmatprep.subr.mxu0 0.0
    %953 = vmatpush1.msra.mxu0 0.0
    %954 = vmatprep.subr.mxu0 0.0
    %955 = vmatpush1.msra.mxu0 0.0
    %956 = vmatprep.subr.mxu0 0.0
    %957 = vmatpush1.msra.mxu0 0.0
    %958 = vmatprep.subr.mxu0 0.0
    %959 = vmatpush1.msra.mxu0 0.0
    %960 = vmatprep.subr.mxu0 0.0
    %961 = vmatpush1.msra.mxu0 0.0
    %962 = vmatprep.subr.mxu0 0.0
    %963 = vmatpush1.msra.mxu0 0.0
    %964 = vmatprep.subr.mxu0 0.0
    %965 = vmatpush1.msra.mxu0 0.0
    %966 = vmatprep.subr.mxu0 0.0
    %967 = vmatpush1.msra.mxu0 0.0
    %968 = vmatprep.subr.mxu0 0.0
    %969 = vmatpush1.msra.mxu0 0.0
    %970 = vmatprep.subr.mxu0 0.0
    %971 = vmatpush1.msra.mxu0 0.0
    %972 = vmatprep.subr.mxu0 0.0
    %973 = vmatpush1.msra.mxu0 %v39
    %974 = vmatprep.subr.mxu0 0.0
    %975 = vmatpush1.msra.mxu0 %v38
    %976 = vmatprep.subr.mxu0 0.0
    %977 = vmatpush1.msra.mxu0 %v37
    %978 = vmatprep.subr.mxu0 0.0
    %979 = vmatpush1.msra.mxu0 %v36
    %980 = vmatprep.subr.mxu0 0.0
    %981 = vmatpush2.msra.mxu0 0.0
    %982 = vmatprep.subr.mxu0 0.0
    %983 = vmatpush2.msra.mxu0 0.0
    %984 = vmatprep.subr.mxu0 0.0
    %985 = vmatpush2.msra.mxu0 0.0
    %986 = vmatprep.subr.mxu0 0.0
    %987 = vmatpush2.msra.mxu0 0.0
    %988 = vmatprep.subr.mxu0 0.0
    %989 = vmatpush2.msra.mxu0 0.0
    %990 = vmatprep.subr.mxu0 0.0
    %991 = vmatpush2.msra.mxu0 0.0
    %992 = vmatprep.subr.mxu0 0.0
    %993 = vmatpush2.msra.mxu0 0.0
    %994 = vmatprep.subr.mxu0 0.0
    %995 = vmatpush2.msra.mxu0 0.0
    %996 = vmatprep.subr.mxu0 0.0
    %997 = vmatpush2.msra.mxu0 0.0
    %998 = vmatprep.subr.mxu0 0.0
    %999 = vmatpush2.msra.mxu0 0.0
    %1000 = vmatprep.subr.mxu0 0.0
    %1001 = vmatpush2.msra.mxu0 0.0
    %1002 = vmatprep.subr.mxu0 0.0
    %1003 = vmatpush2.msra.mxu0 0.0
    %1004 = vmatprep.subr.mxu0 0.0
    %1005 = vmatpush2.msra.mxu0 0.0
    %1006 = vmatprep.subr.mxu0 0.0
    %1007 = vmatpush2.msra.mxu0 0.0
    %1008 = vmatprep.subr.mxu0 0.0
    %1009 = vmatpush2.msra.mxu0 0.0
    %1010 = vmatprep.subr.mxu0 0.0
    %1011 = vmatpush2.msra.mxu0 0.0
    %1012 = vmatprep.mubr.f32.mxu0 0.0
    %1013 = vmatmul.mubr.f32.gmra.mxu0 %v946
    %v1014 = vpop.f32.mrf.mxu0
    %v1015 = vadd.f32 0.0, %v1014
    %v1016 = vpop.f32.mrf.mxu0
    %1017 = vdwg.mxu0
    %v1019 = vrot.slane %v1015, 1
    %v1022 = vadd.f32 %v940, %v1015
    %v1023 = vadd.f32 %v941, %v1019
    %v1024 = vxor.u32 %v1022, 2147483648
    %v1025 = vxor.u32 %v1023, 2147483648
    %v1026 = vmul.f32 %v1024, 1.442695
    %v1027 = vpow.pop %v1026
    %v1028 = vmul.f32 %v1025, 1.442695
    %v1029 = vpow.pop %v1028
    %v1030 = vadd.f32 %v1027, 1.0
    %v1031 = vadd.f32 %v1029, 1.0
    %v1032 = vrcp.pop %v1030
    %v1033 = vmul.f32 1.0, %v1032
    %v1034 = vrcp.pop %v1031
    %v1035 = vmul.f32 1.0, %v1034
    %v1036 = vtanh.pop %v1022
    %v1037 = vtanh.pop %v1023
    %v1038 = vmul.f32 %v1033, %v899
    %v1039 = vmul.f32 %v1035, %v900
    %1042 = vrot.lane.b32.xlu0 %v1036, 32
    %v1043 = vpop.permute.xlu0 %1042
    %1044 = vrot.lane.b32.xlu0 %v1037, 32
    %v1045 = vpop.permute.xlu0 %1044
    %v1048 = vmul.f32 %v1033, %v1043
    %v1049 = vmul.f32 %v1035, %v1045
    %1052 = vrot.lane.b32.xlu0 %v1048, 32
    %v1053 = vpop.permute.xlu0 %1052
    %1054 = vrot.lane.b32.xlu0 %v1049, 32
    %v1055 = vpop.permute.xlu0 %1054
    %v1058 = vadd.f32 %v1038, %v1053
    %v1059 = vadd.f32 %v1039, %v1055
    %v1060 = vtanh.pop %v1058
    %v1061 = vtanh.pop %v1059
    %1064 = vrot.lane.b32.xlu0 %v1060, 32
    %v1065 = vpop.permute.xlu0 %1064
    %1066 = vrot.lane.b32.xlu0 %v1061, 32
    %v1067 = vpop.permute.xlu0 %1066
    %v1070 = vmul.f32 %v1033, %v1065
    %v1071 = vmul.f32 %v1035, %v1067
    %v1075 = vunpack.c.l.s4 1983009808
    %v1076 = vunpack.c.0.s8 %v1075
    %v1077 = vlaneseq
    %v1078 = vshrl.u32 %v1077, 7
    %v1079 = vsub.s32 %v1076, %v1078
    %v1080 = vrot.slane %v1070, %v1079
    %v1082 = vunpack.c.l.s4 1983009808
    %v1083 = vunpack.c.0.s8 %v1082
    %v1084 = vlaneseq
    %v1085 = vshrl.u32 %v1084, 7
    %v1086 = vsub.s32 %v1083, %v1085
    %v1087 = vrot.slane %v1071, %v1086
    %v1088 = vsel %vm285, %v1080, %v1080
    %v1089 = vsel %vm287, %v1080, %v1088
    %v1090 = vrot.slane %v1087, 7
    %v1091 = vsel %vm290, %v1090, %v1089
    %v1092 = vsel %vm292, %v1090, %v1091
    %v1093 = vsel %vm294, %v1090, %v1092
    %v1094 = vsel %vm296, %v1090, %v1093
    %1095 = vrot.lane.b32.xlu0 %v1094, 96
    %v1096 = vpop.permute.xlu0 %1095
    %1098 = vst.msk [vmem:[%s4 + $0x2] sm:$0x3] %vm461, %v1096
    %v1099 = vld [vmem:[#allocation2 + $0x6] sm:$0x1]
    %v1100 = vld [vmem:[#allocation2 + $0xe] sm:$0x1]
    %v1101 = vrot.slane %v1071, 7
    %v1102 = vsel %vm290, %v1101, %v1070
    %1103 = vrot.lane.b32.xlu0 %v1102, 64
    %v1104 = vpop.permute.xlu0 %1103
    %v1105 = vsel %vm141, %v1104, 0
    %1107 = vmatprep.subr.mxu0 0.0
    %1108 = vmatpush1.msra.mxu0 0.0
    %1109 = vmatprep.subr.mxu0 0.0
    %1110 = vmatpush1.msra.mxu0 0.0
    %1111 = vmatprep.subr.mxu0 0.0
    %1112 = vmatpush1.msra.mxu0 0.0
    %1113 = vmatprep.subr.mxu0 0.0
    %1114 = vmatpush1.msra.mxu0 0.0
    %1115 = vmatprep.subr.mxu0 0.0
    %1116 = vmatpush1.msra.mxu0 0.0
    %1117 = vmatprep.subr.mxu0 0.0
    %1118 = vmatpush1.msra.mxu0 0.0
    %1119 = vmatprep.subr.mxu0 0.0
    %1120 = vmatpush1.msra.mxu0 0.0
    %1121 = vmatprep.subr.mxu0 0.0
    %1122 = vmatpush1.msra.mxu0 0.0
    %1123 = vmatprep.subr.mxu0 0.0
    %1124 = vmatpush1.msra.mxu0 0.0
    %1125 = vmatprep.subr.mxu0 0.0
    %1126 = vmatpush1.msra.mxu0 0.0
    %1127 = vmatprep.subr.mxu0 0.0
    %1128 = vmatpush1.msra.mxu0 0.0
    %1129 = vmatprep.subr.mxu0 0.0
    %1130 = vmatpush1.msra.mxu0 0.0
    %1131 = vmatprep.subr.mxu0 0.0
    %1132 = vmatpush1.msra.mxu0 %v39
    %1133 = vmatprep.subr.mxu0 0.0
    %1134 = vmatpush1.msra.mxu0 %v38
    %1135 = vmatprep.subr.mxu0 0.0
    %1136 = vmatpush1.msra.mxu0 %v37
    %1137 = vmatprep.subr.mxu0 0.0
    %1138 = vmatpush1.msra.mxu0 %v36
    %1139 = vmatprep.subr.mxu0 0.0
    %1140 = vmatpush2.msra.mxu0 0.0
    %1141 = vmatprep.subr.mxu0 0.0
    %1142 = vmatpush2.msra.mxu0 0.0
    %1143 = vmatprep.subr.mxu0 0.0
    %1144 = vmatpush2.msra.mxu0 0.0
    %1145 = vmatprep.subr.mxu0 0.0
    %1146 = vmatpush2.msra.mxu0 0.0
    %1147 = vmatprep.subr.mxu0 0.0
    %1148 = vmatpush2.msra.mxu0 0.0
    %1149 = vmatprep.subr.mxu0 0.0
    %1150 = vmatpush2.msra.mxu0 0.0
    %1151 = vmatprep.subr.mxu0 0.0
    %1152 = vmatpush2.msra.mxu0 0.0
    %1153 = vmatprep.subr.mxu0 0.0
    %1154 = vmatpush2.msra.mxu0 0.0
    %1155 = vmatprep.subr.mxu0 0.0
    %1156 = vmatpush2.msra.mxu0 0.0
    %1157 = vmatprep.subr.mxu0 0.0
    %1158 = vmatpush2.msra.mxu0 0.0
    %1159 = vmatprep.subr.mxu0 0.0
    %1160 = vmatpush2.msra.mxu0 0.0
    %1161 = vmatprep.subr.mxu0 0.0
    %1162 = vmatpush2.msra.mxu0 0.0
    %1163 = vmatprep.subr.mxu0 0.0
    %1164 = vmatpush2.msra.mxu0 0.0
    %1165 = vmatprep.subr.mxu0 0.0
    %1166 = vmatpush2.msra.mxu0 0.0
    %1167 = vmatprep.subr.mxu0 0.0
    %1168 = vmatpush2.msra.mxu0 0.0
    %1169 = vmatprep.subr.mxu0 0.0
    %1170 = vmatpush2.msra.mxu0 0.0
    %1171 = vmatprep.mubr.f32.mxu0 0.0
    %1172 = vmatmul.mubr.f32.gmra.mxu0 %v1105
    %v1173 = vpop.f32.mrf.mxu0
    %v1174 = vadd.f32 0.0, %v1173
    %v1175 = vpop.f32.mrf.mxu0
    %1176 = vdwg.mxu0
    %v1178 = vrot.slane %v1174, 1
    %v1181 = vadd.f32 %v1099, %v1174
    %v1182 = vadd.f32 %v1100, %v1178
    %v1183 = vxor.u32 %v1181, 2147483648
    %v1184 = vxor.u32 %v1182, 2147483648
    %v1185 = vmul.f32 %v1183, 1.442695
    %v1186 = vpow.pop %v1185
    %v1187 = vmul.f32 %v1184, 1.442695
    %v1188 = vpow.pop %v1187
    %v1189 = vadd.f32 %v1186, 1.0
    %v1190 = vadd.f32 %v1188, 1.0
    %v1191 = vrcp.pop %v1189
    %v1192 = vmul.f32 1.0, %v1191
    %v1193 = vrcp.pop %v1190
    %v1194 = vmul.f32 1.0, %v1193
    %v1195 = vtanh.pop %v1181
    %v1196 = vtanh.pop %v1182
    %v1197 = vmul.f32 %v1192, %v1058
    %v1198 = vmul.f32 %v1194, %v1059
    %1201 = vrot.lane.b32.xlu0 %v1195, 32
    %v1202 = vpop.permute.xlu0 %1201
    %1203 = vrot.lane.b32.xlu0 %v1196, 32
    %v1204 = vpop.permute.xlu0 %1203
    %v1207 = vmul.f32 %v1192, %v1202
    %v1208 = vmul.f32 %v1194, %v1204
    %1211 = vrot.lane.b32.xlu0 %v1207, 32
    %v1212 = vpop.permute.xlu0 %1211
    %1213 = vrot.lane.b32.xlu0 %v1208, 32
    %v1214 = vpop.permute.xlu0 %1213
    %v1217 = vadd.f32 %v1197, %v1212
    %v1218 = vadd.f32 %v1198, %v1214
    %v1219 = vtanh.pop %v1217
    %v1220 = vtanh.pop %v1218
    %1223 = vrot.lane.b32.xlu0 %v1219, 32
    %v1224 = vpop.permute.xlu0 %1223
    %1225 = vrot.lane.b32.xlu0 %v1220, 32
    %v1226 = vpop.permute.xlu0 %1225
    %v1229 = vmul.f32 %v1192, %v1224
    %v1230 = vmul.f32 %v1194, %v1226
    %v1234 = vunpack.c.l.s4 1983009808
    %v1235 = vunpack.c.0.s8 %v1234
    %v1236 = vlaneseq
    %v1237 = vshrl.u32 %v1236, 7
    %v1238 = vsub.s32 %v1235, %v1237
    %v1239 = vrot.slane %v1229, %v1238
    %v1241 = vunpack.c.l.s4 1983009808
    %v1242 = vunpack.c.0.s8 %v1241
    %v1243 = vlaneseq
    %v1244 = vshrl.u32 %v1243, 7
    %v1245 = vsub.s32 %v1242, %v1244
    %v1246 = vrot.slane %v1230, %v1245
    %v1247 = vsel %vm285, %v1239, %v1239
    %v1248 = vsel %vm287, %v1239, %v1247
    %v1249 = vrot.slane %v1246, 7
    %v1250 = vsel %vm290, %v1249, %v1248
    %v1251 = vsel %vm292, %v1249, %v1250
    %v1252 = vsel %vm294, %v1249, %v1251
    %v1253 = vsel %vm296, %v1249, %v1252
    %1255 = vst.msk [vmem:[%s4 + $0x2] sm:$0x3] %vm619, %v1253
    %v1256 = vld [vmem:[#allocation2 + $0x7] sm:$0x1]
    %v1257 = vld [vmem:[#allocation2 + $0xf] sm:$0x1]
    %v1258 = vrot.slane %v1230, 7
    %v1259 = vsel %vm290, %v1258, %v1229
    %1260 = vrot.lane.b32.xlu0 %v1259, 64
    %v1261 = vpop.permute.xlu0 %1260
    %v1262 = vsel %vm141, %v1261, 0
    %1264 = vmatprep.subr.mxu0 0.0
    %1265 = vmatpush1.msra.mxu0 0.0
    %1266 = vmatprep.subr.mxu0 0.0
    %1267 = vmatpush1.msra.mxu0 0.0
    %1268 = vmatprep.subr.mxu0 0.0
    %1269 = vmatpush1.msra.mxu0 0.0
    %1270 = vmatprep.subr.mxu0 0.0
    %1271 = vmatpush1.msra.mxu0 0.0
    %1272 = vmatprep.subr.mxu0 0.0
    %1273 = vmatpush1.msra.mxu0 0.0
    %1274 = vmatprep.subr.mxu0 0.0
    %1275 = vmatpush1.msra.mxu0 0.0
    %1276 = vmatprep.subr.mxu0 0.0
    %1277 = vmatpush1.msra.mxu0 0.0
    %1278 = vmatprep.subr.mxu0 0.0
    %1279 = vmatpush1.msra.mxu0 0.0
    %1280 = vmatprep.subr.mxu0 0.0
    %1281 = vmatpush1.msra.mxu0 0.0
    %1282 = vmatprep.subr.mxu0 0.0
    %1283 = vmatpush1.msra.mxu0 0.0
    %1284 = vmatprep.subr.mxu0 0.0
    %1285 = vmatpush1.msra.mxu0 0.0
    %1286 = vmatprep.subr.mxu0 0.0
    %1287 = vmatpush1.msra.mxu0 0.0
    %1288 = vmatprep.subr.mxu0 0.0
    %1289 = vmatpush1.msra.mxu0 %v39
    %1290 = vmatprep.subr.mxu0 0.0
    %1291 = vmatpush1.msra.mxu0 %v38
    %1292 = vmatprep.subr.mxu0 0.0
    %1293 = vmatpush1.msra.mxu0 %v37
    %1294 = vmatprep.subr.mxu0 0.0
    %1295 = vmatpush1.msra.mxu0 %v36
    %1296 = vmatprep.subr.mxu0 0.0
    %1297 = vmatpush2.msra.mxu0 0.0
    %1298 = vmatprep.subr.mxu0 0.0
    %1299 = vmatpush2.msra.mxu0 0.0
    %1300 = vmatprep.subr.mxu0 0.0
    %1301 = vmatpush2.msra.mxu0 0.0
    %1302 = vmatprep.subr.mxu0 0.0
    %1303 = vmatpush2.msra.mxu0 0.0
    %1304 = vmatprep.subr.mxu0 0.0
    %1305 = vmatpush2.msra.mxu0 0.0
    %1306 = vmatprep.subr.mxu0 0.0
    %1307 = vmatpush2.msra.mxu0 0.0
    %1308 = vmatprep.subr.mxu0 0.0
    %1309 = vmatpush2.msra.mxu0 0.0
    %1310 = vmatprep.subr.mxu0 0.0
    %1311 = vmatpush2.msra.mxu0 0.0
    %1312 = vmatprep.subr.mxu0 0.0
    %1313 = vmatpush2.msra.mxu0 0.0
    %1314 = vmatprep.subr.mxu0 0.0
    %1315 = vmatpush2.msra.mxu0 0.0
    %1316 = vmatprep.subr.mxu0 0.0
    %1317 = vmatpush2.msra.mxu0 0.0
    %1318 = vmatprep.subr.mxu0 0.0
    %1319 = vmatpush2.msra.mxu0 0.0
    %1320 = vmatprep.subr.mxu0 0.0
    %1321 = vmatpush2.msra.mxu0 0.0
    %1322 = vmatprep.subr.mxu0 0.0
    %1323 = vmatpush2.msra.mxu0 0.0
    %1324 = vmatprep.subr.mxu0 0.0
    %1325 = vmatpush2.msra.mxu0 0.0
    %1326 = vmatprep.subr.mxu0 0.0
    %1327 = vmatpush2.msra.mxu0 0.0
    %1328 = vmatprep.mubr.f32.mxu0 0.0
    %1329 = vmatmul.mubr.f32.gmra.mxu0 %v1262
    %v1330 = vpop.f32.mrf.mxu0
    %v1331 = vadd.f32 0.0, %v1330
    %v1332 = vpop.f32.mrf.mxu0
    %1333 = vdwg.mxu0
    %v1335 = vrot.slane %v1331, 1
    %v1338 = vadd.f32 %v1256, %v1331
    %v1339 = vadd.f32 %v1257, %v1335
    %v1340 = vxor.u32 %v1338, 2147483648
    %v1341 = vxor.u32 %v1339, 2147483648
    %v1342 = vmul.f32 %v1340, 1.442695
    %v1343 = vpow.pop %v1342
    %v1344 = vmul.f32 %v1341, 1.442695
    %v1345 = vpow.pop %v1344
    %v1346 = vadd.f32 %v1343, 1.0
    %v1347 = vadd.f32 %v1345, 1.0
    %v1348 = vrcp.pop %v1346
    %v1349 = vmul.f32 1.0, %v1348
    %v1350 = vrcp.pop %v1347
    %v1351 = vmul.f32 1.0, %v1350
    %v1352 = vtanh.pop %v1338
    %v1353 = vtanh.pop %v1339
    %v1354 = vmul.f32 %v1349, %v1217
    %v1355 = vmul.f32 %v1351, %v1218
    %1358 = vrot.lane.b32.xlu0 %v1352, 32
    %v1359 = vpop.permute.xlu0 %1358
    %1360 = vrot.lane.b32.xlu0 %v1353, 32
    %v1361 = vpop.permute.xlu0 %1360
    %v1364 = vmul.f32 %v1349, %v1359
    %v1365 = vmul.f32 %v1351, %v1361
    %1368 = vrot.lane.b32.xlu0 %v1364, 32
    %v1369 = vpop.permute.xlu0 %1368
    %1370 = vrot.lane.b32.xlu0 %v1365, 32
    %v1371 = vpop.permute.xlu0 %1370
    %v1374 = vadd.f32 %v1354, %v1369
    %v1375 = vadd.f32 %v1355, %v1371
    %v1376 = vtanh.pop %v1374
    %v1377 = vtanh.pop %v1375
    %1380 = vrot.lane.b32.xlu0 %v1376, 32
    %v1381 = vpop.permute.xlu0 %1380
    %1382 = vrot.lane.b32.xlu0 %v1377, 32
    %v1383 = vpop.permute.xlu0 %1382
    %v1386 = vmul.f32 %v1349, %v1381
    %v1387 = vmul.f32 %v1351, %v1383
    %v1391 = vunpack.c.l.s4 1983009808
    %v1392 = vunpack.c.0.s8 %v1391
    %v1393 = vlaneseq
    %v1394 = vshrl.u32 %v1393, 7
    %v1395 = vsub.s32 %v1392, %v1394
    %v1396 = vrot.slane %v1386, %v1395
    %v1398 = vunpack.c.l.s4 1983009808
    %v1399 = vunpack.c.0.s8 %v1398
    %v1400 = vlaneseq
    %v1401 = vshrl.u32 %v1400, 7
    %v1402 = vsub.s32 %v1399, %v1401
    %v1403 = vrot.slane %v1387, %v1402
    %v1404 = vsel %vm285, %v1396, %v1396
    %v1405 = vsel %vm287, %v1396, %v1404
    %v1406 = vrot.slane %v1403, 7
    %v1407 = vsel %vm290, %v1406, %v1405
    %v1408 = vsel %vm292, %v1406, %v1407
    %v1409 = vsel %vm294, %v1406, %v1408
    %v1410 = vsel %vm296, %v1406, %v1409
    %1411 = vrot.lane.b32.xlu0 %v1410, 32
    %v1412 = vpop.permute.xlu0 %1411
    %1414 = vst.msk [vmem:[%s4 + $0x2] sm:$0x3] %vm779, %v1412
    %v1415 = vrot.slane %v1387, 7
    %v1416 = vsel %vm290, %v1415, %v1386
    %1417 = vrot.lane.b32.xlu0 %v1416, 64
    %v1418 = vpop.permute.xlu0 %1417
    %1420 = vst.msk [vmem:[#allocation6] sm:$0x3] %vm301, %v1418
    %v1423 = vrot.slane %v1375, 7
    %v1424 = vsel %vm290, %v1423, %v1374
    %1425 = vrot.lane.b32.xlu0 %v1424, 96
    %v1426 = vpop.permute.xlu0 %1425
    %1428 = vst.msk [vmem:[#allocation7] sm:$0x3] %vm301, %v1426
    // Predicated region
    $region22: #{rnn_encoder_forward.1} parent=1 // pred_check
      _
    $region23: #{rnn_encoder_forward.1} parent=1 // pred_check_branch
      %1430 = sbr.rel (0) target = $region25
    $region24: #{rnn_encoder_forward.1} parent=1 // pred_region
      _
    $region25: #{rnn_encoder_forward.1} parent=1 // pred_fallthru
      _
    // Predicated region
    $region26: #{rnn_encoder_forward.1} parent=1 // pred_check
      _
    $region27: #{rnn_encoder_forward.1} parent=1 // pred_check_branch
      %1432 = sbr.rel (0) target = $region29
    $region28: #{rnn_encoder_forward.1} parent=1 // pred_region
      %s1434 = ssub.s32 32, 32
      %1435 = vsyncadd [#allocation5], %s1434
      %s1437 = sshll.u32 [#allocation6], 4
      %s1438 = int_to_ptr.vmem [resolvable:$true] %s1437
      %1440 = dma.vmem_to_hbm [thread:$0]  %s1438, 32, %s5, [#allocation5]
    $region29: #{rnn_encoder_forward.1} parent=1 // pred_fallthru
      _
    // Predicated region
    $region30: #{rnn_encoder_forward.1} parent=1 // pred_check
      _
    $region31: #{rnn_encoder_forward.1} parent=1 // pred_check_branch
      %1442 = sbr.rel (0) target = $region33
    $region32: #{rnn_encoder_forward.1} parent=1 // pred_region
      %s1444 = ssub.s32 32, 32
      %1445 = vsyncadd [#allocation8], %s1444
      %s1447 = sshll.u32 [#allocation7], 4
      %s1448 = int_to_ptr.vmem [resolvable:$true] %s1447
      %1450 = dma.vmem_to_hbm [thread:$0]  %s1448, 32, %s6, [#allocation8]
    $region33: #{rnn_encoder_forward.1} parent=1 // pred_fallthru
      _
    // Predicated region
    $region34: #{rnn_encoder_forward.1} parent=1 // pred_check
      _
    $region35: #{rnn_encoder_forward.1} parent=1 // pred_check_branch
      %1452 = sbr.rel (0) target = $region37
    $region36: #{rnn_encoder_forward.1} parent=1 // pred_region
      _
    $region37: #{rnn_encoder_forward.1} parent=1 // pred_fallthru
      _
    // Predicated region
    $region38: #{rnn_encoder_forward.1} parent=1 // pred_check
      _
    $region39: #{rnn_encoder_forward.1} parent=1 // pred_check_branch
      %1454 = sbr.rel (0) target = $region41
    $region40: #{rnn_encoder_forward.1} parent=1 // pred_region
      %1455 = dma.done [#allocation5], 32
    $region41: #{rnn_encoder_forward.1} parent=1 // pred_fallthru
      _
    // Predicated region
    $region42: #{rnn_encoder_forward.1} parent=1 // pred_check
      _
    $region43: #{rnn_encoder_forward.1} parent=1 // pred_check_branch
      %1457 = sbr.rel (0) target = $region45
    $region44: #{rnn_encoder_forward.1} parent=1 // pred_region
      %1458 = dma.done [#allocation8], 32
    $region45: #{rnn_encoder_forward.1} parent=1 // pred_fallthru
      _
    %1459 = vsyncpa [#allocation4], 1
    %1460 = vsyncpa [#allocation5], 1
    %1461 = vsyncpa [#allocation8], 1

</llo_original>
